<compile_context>
chip_gen: v7x
topology: tpu7x:2x2x1
jax: 0.10.0
libtpu: 0.0.40
codegen_flags: <defaults>
</compile_context>

<pallas_src>
import jax
import jax.numpy as jnp
from jax import lax
from jax.experimental import pallas as pl
from jax.experimental.pallas import tpu as pltpu

EPS = 1e-3  # matches BatchNorm2d(384, eps=0.001) in the source module


def _fused_kernel(x_ref, g_ref, w_ref, gamma_ref, beta_ref, o_ref, acc_ref):
    # x_ref:     (M, TK)    bf16 pre-gate activations (K chunk)
    # g_ref:     (1, TK)    f32 SE gate logits (K chunk), broadcast over rows (N == 1)
    # w_ref:     (TN, TK)   bf16 conv weight tile, (Cout, Cin) orientation (no transpose)
    # gamma/beta:(1, TN)    f32 batchnorm affine params for this Cout tile
    # o_ref:     (M, TN)    f32 output tile
    # acc_ref:   (M, TN)    f32 accumulator scratch
    k = pl.program_id(1)

    @pl.when(k == 0)
    def _():
        acc_ref[...] = jnp.zeros_like(acc_ref)

    # sigmoid gate (EUP) + broadcast multiply, then down-cast for the bf16 MXU path.
    gate = jax.nn.sigmoid(g_ref[...])                       # sigmoid31, f32
    xg = (x_ref[...] * gate).astype(jnp.bfloat16)           # operator.mul, (M, TK)

    # conv2d192 as GEMM: contract over Cin chunk; rhs is (Cout, Cin) so contract dim 1.
    acc_ref[...] += lax.dot_general(
        xg, w_ref[...],
        dimension_numbers=(((1,), (1,)), ((), ())),
        preferred_element_type=jnp.float32)

    @pl.when(k == pl.num_programs(1) - 1)
    def _():
        # batchnorm2d128, training mode: biased batch stats over (N, H, W) == rows.
        # BN stats are per output channel, so per-Cout-tile stats are exact.
        y = acc_ref[...]
        inv_m = 1.0 / y.shape[0]
        mean = jnp.sum(y, axis=0, keepdims=True) * inv_m
        ex2 = jnp.sum(y * y, axis=0, keepdims=True) * inv_m
        var = jnp.maximum(ex2 - mean * mean, 0.0)
        inv = lax.rsqrt(var + EPS)
        o_ref[...] = (y - mean) * (inv * gamma_ref[...]) + beta_ref[...]


def fused_sigmoid_mul_conv_bn(x613, x617, conv_w, bn_gamma, bn_beta):
    """x613: (N, Cin, H, W) NCHW; x617: (N, Cin, 1, 1); conv_w: (Cout, Cin, 1, 1)."""
    N, Cin, H, W = x613.shape
    Cout = conv_w.shape[0]
    assert N == 1, "gate broadcast over rows assumes N == 1 (as in the source module)"
    M = N * H * W

    # NCHW -> (M, Cin) rows (NHWC flattened); bf16 halves the activation DMA.
    x_rows = jnp.transpose(x613, (0, 2, 3, 1)).reshape(M, Cin).astype(jnp.bfloat16)
    gate = x617.reshape(1, Cin)                              # f32, tiny
    w = conv_w.reshape(Cout, Cin).astype(jnp.bfloat16)       # (Cout, Cin), NO transpose
    gamma = bn_gamma.reshape(1, Cout)
    beta = bn_beta.reshape(1, Cout)

    TN = 128                       # lane-dense Cout tile (unmasked vst), 3 tiles
    TK = 1152                      # Cin reduction tile (multiple of 128), 2 steps
    assert Cout % TN == 0 and Cin % TK == 0
    grid = (Cout // TN, Cin // TK)

    out_rows = pl.pallas_call(
        _fused_kernel,
        out_shape=jax.ShapeDtypeStruct((M, Cout), jnp.float32),
        grid=grid,
        in_specs=[
            pl.BlockSpec((M, TK), lambda j, k: (0, k)),      # activations (rows resident)
            pl.BlockSpec((1, TK), lambda j, k: (0, k)),      # gate logits
            pl.BlockSpec((TN, TK), lambda j, k: (j, k)),     # weight tile
            pl.BlockSpec((1, TN), lambda j, k: (0, j)),      # gamma
            pl.BlockSpec((1, TN), lambda j, k: (0, j)),      # beta
        ],
        out_specs=pl.BlockSpec((M, TN), lambda j, k: (0, j)),
        scratch_shapes=[pltpu.VMEM((M, TN), jnp.float32)],
        compiler_params=pltpu.CompilerParams(
            dimension_semantics=("parallel", "arbitrary"),   # Cout tiles shard across TCs on v7x
            vmem_limit_bytes=16 << 20,                       # footprint is ~1.5 MiB; leave headroom
        ),
    )(x_rows, gate, w, gamma, beta)

    # (M, Cout) -> NCHW (N, Cout, H, W)
    return jnp.transpose(out_rows.reshape(N, H, W, Cout), (0, 3, 1, 2))


def _reference(x613, x617, conv_w, bn_gamma, bn_beta):
    # pure-JAX f32 reference matching the PyTorch training-mode forward
    g = jax.nn.sigmoid(x617)
    xg = g * x613
    y = jnp.einsum("nchw,oc->nohw", xg, conv_w.reshape(conv_w.shape[0], conv_w.shape[1]))
    mean = jnp.mean(y, axis=(0, 2, 3), keepdims=True)
    var = jnp.mean((y - mean) ** 2, axis=(0, 2, 3), keepdims=True)
    return (y - mean) / jnp.sqrt(var + EPS) * bn_gamma[None, :, None, None] + \
        bn_beta[None, :, None, None]


if __name__ == "__main__":
    key = jax.random.PRNGKey(0)
    k1, k2, k3, k4, k5 = jax.random.split(key, 5)

    # Shapes implied by the module's forward.
    N, Cin, Cout, H, W = 1, 2304, 384, 7, 7

    x613 = jax.random.normal(k1, (N, Cin, H, W), dtype=jnp.float32)
    x617 = jax.random.normal(k2, (N, Cin, 1, 1), dtype=jnp.float32)

    conv_w = jax.random.normal(k3, (Cout, Cin, 1, 1), dtype=jnp.float32) * (1.0 / jnp.sqrt(Cin))
    bn_gamma = jnp.ones((Cout,), dtype=jnp.float32) + 0.01 * jax.random.normal(k4, (Cout,), dtype=jnp.float32)
    bn_beta = 0.01 * jax.random.normal(k5, (Cout,), dtype=jnp.float32)

    # TODO(synk): BatchNorm running_mean/running_var buffers are not updated (the returned
    # forward value only depends on batch stats, matching PyTorch training-mode output).
    out = fused_sigmoid_mul_conv_bn(x613, x617, conv_w, bn_gamma, bn_beta)
    out = jax.block_until_ready(out)

    ref = _reference(x613, x617, conv_w, bn_gamma, bn_beta)
    assert out.shape == (N, Cout, H, W), out.shape
    # Tolerance reflects bf16 matmul operands with f32 accumulation vs the f32 reference.
    assert jnp.allclose(out, ref, atol=2e-2, rtol=2e-2), float(jnp.max(jnp.abs(out - ref)))

    print("KERNEL_OK")
</pallas_src>

<mosaic_0001>
module attributes {stable_mosaic.version = 11 : i64} {
  func.func @_fused_kernel(%arg0: i32, %arg1: i32, %arg2: memref<49x1152xbf16, #tpu.memory_space<vmem>>, %arg3: memref<1x1152xf32, #tpu.memory_space<vmem>>, %arg4: memref<128x1152xbf16, #tpu.memory_space<vmem>>, %arg5: memref<1x128xf32, #tpu.memory_space<vmem>>, %arg6: memref<1x128xf32, #tpu.memory_space<vmem>>, %arg7: memref<49x128xf32, #tpu.memory_space<vmem>>, %arg8: memref<49x128xf32, #tpu.memory_space<vmem>>) attributes {dimension_semantics = [#tpu.dimension_semantics<parallel>, #tpu.dimension_semantics<arbitrary>], iteration_bounds = array<i64: 3, 2>, scalar_prefetch = 0 : i64, scratch_operands = 1 : i64, tpu.core_type = #tpu.core_type<tc>, window_params = [{transform_indices = @transform_0, window_bounds = array<i64: 49, 1152>}, {transform_indices = @transform_1, window_bounds = array<i64: 1, 1152>}, {transform_indices = @transform_2, window_bounds = array<i64: 128, 1152>}, {transform_indices = @transform_3, window_bounds = array<i64: 1, 128>}, {transform_indices = @transform_4, window_bounds = array<i64: 1, 128>}, {transform_indices = @transform_5, window_bounds = array<i64: 49, 128>}]} {
    %c0_i32 = arith.constant 0 : i32
    %0 = arith.cmpi eq, %arg1, %c0_i32 : i32
    %1 = arith.extui %0 : i1 to i32
    %c0_i32_0 = arith.constant 0 : i32
    %2 = arith.cmpi ne, %1, %c0_i32_0 : i32
    scf.if %2 {
      %cst_12 = arith.constant 0.000000e+00 : f32
      %22 = vector.broadcast %cst_12 : f32 to vector<49x128xf32>
      %c0_13 = arith.constant 0 : index
      %c0_14 = arith.constant 0 : index
      %23 = vector.load %arg8[%c0_13, %c0_14] : memref<49x128xf32, #tpu.memory_space<vmem>>, vector<49x128xf32>
      tpu.vector_store %arg8[%c0_13, %c0_14], %22 {strides = array<i32>} : memref<49x128xf32, #tpu.memory_space<vmem>>, vector<49x128xf32>,
    } else {
    }
    %c0 = arith.constant 0 : index
    %c0_1 = arith.constant 0 : index
    %3 = vector.load %arg3[%c0, %c0_1] : memref<1x1152xf32, #tpu.memory_space<vmem>>, vector<1x1152xf32>
    %4 = arith.negf %3 : vector<1x1152xf32>
    %5 = math.exp %4 : vector<1x1152xf32>
    %cst = arith.constant 1.000000e+00 : f32
    %6 = vector.broadcast %cst : f32 to vector<1x1152xf32>
    %7 = arith.addf %6, %5 : vector<1x1152xf32>
    %8 = arith.divf %6, %7 : vector<1x1152xf32>
    %c0_2 = arith.constant 0 : index
    %c0_3 = arith.constant 0 : index
    %9 = vector.load %arg2[%c0_2, %c0_3] : memref<49x1152xbf16, #tpu.memory_space<vmem>>, vector<49x1152xbf16>
    %10 = arith.extf %9 : vector<49x1152xbf16> to vector<49x1152xf32>
    %11 = vector.broadcast %8 : vector<1x1152xf32> to vector<49x1152xf32>
    %12 = arith.mulf %10, %11 : vector<49x1152xf32>
    %13 = arith.truncf %12 : vector<49x1152xf32> to vector<49x1152xbf16>
    %c0_4 = arith.constant 0 : index
    %c0_5 = arith.constant 0 : index
    %14 = vector.load %arg8[%c0_4, %c0_5] : memref<49x128xf32, #tpu.memory_space<vmem>>, vector<49x128xf32>
    %c0_6 = arith.constant 0 : index
    %c0_7 = arith.constant 0 : index
    %15 = vector.load %arg4[%c0_6, %c0_7] : memref<128x1152xbf16, #tpu.memory_space<vmem>>, vector<128x1152xbf16>
    %cst_8 = arith.constant dense<0.000000e+00> : vector<49x128xf32>
    %16 = tpu.matmul %13, %15, %cst_8 {dimension_numbers = #tpu.dot_dimension_numbers<[1], [1], [0], [0], [0, 0, 1, 0], [], []>} : vector<49x1152xbf16>, vector<128x1152xbf16>, vector<49x128xf32> -> vector<49x128xf32>
    %17 = arith.addf %14, %16 : vector<49x128xf32>
    %c0_9 = arith.constant 0 : index
    %c0_10 = arith.constant 0 : index
    %18 = vector.load %arg8[%c0_9, %c0_10] : memref<49x128xf32, #tpu.memory_space<vmem>>, vector<49x128xf32>
    tpu.vector_store %arg8[%c0_9, %c0_10], %17 {strides = array<i32>} : memref<49x128xf32, #tpu.memory_space<vmem>>, vector<49x128xf32>,
    %c1_i32 = arith.constant 1 : i32
    %19 = arith.cmpi eq, %arg1, %c1_i32 : i32
    %20 = arith.extui %19 : i1 to i32
    %c0_i32_11 = arith.constant 0 : i32
    %21 = arith.cmpi ne, %20, %c0_i32_11 : i32
    scf.if %21 {
      %c0_12 = arith.constant 0 : index
      %c0_13 = arith.constant 0 : index
      %22 = vector.load %arg8[%c0_12, %c0_13] : memref<49x128xf32, #tpu.memory_space<vmem>>, vector<49x128xf32>
      %cst_14 = arith.constant dense<0.000000e+00> : vector<128xf32>
      %23 = vector.multi_reduction <add>, %22, %cst_14 [0] : vector<49x128xf32> to vector<128xf32>
      %24 = vector.shape_cast %23 : vector<128xf32> to vector<1x128xf32>
      %cst_15 = arith.constant 0.0204081628 : f32
      %25 = vector.broadcast %cst_15 : f32 to vector<1x128xf32>
      %26 = arith.mulf %24, %25 : vector<1x128xf32>
      %27 = arith.mulf %22, %22 : vector<49x128xf32>
      %cst_16 = arith.constant dense<0.000000e+00> : vector<128xf32>
      %28 = vector.multi_reduction <add>, %27, %cst_16 [0] : vector<49x128xf32> to vector<128xf32>
      %29 = vector.shape_cast %28 : vector<128xf32> to vector<1x128xf32>
      %cst_17 = arith.constant 0.0204081628 : f32
      %30 = vector.broadcast %cst_17 : f32 to vector<1x128xf32>
      %31 = arith.mulf %29, %30 : vector<1x128xf32>
      %32 = arith.mulf %26, %26 : vector<1x128xf32>
      %33 = arith.subf %31, %32 : vector<1x128xf32>
      %cst_18 = arith.constant 0.000000e+00 : f32
      %34 = vector.broadcast %cst_18 : f32 to vector<1x128xf32>
      %35 = arith.maximumf %33, %34 : vector<1x128xf32>
      %cst_19 = arith.constant 1.000000e-03 : f32
      %36 = vector.broadcast %cst_19 : f32 to vector<1x128xf32>
      %37 = arith.addf %35, %36 : vector<1x128xf32>
      %38 = math.rsqrt %37 : vector<1x128xf32>
      %39 = vector.broadcast %26 : vector<1x128xf32> to vector<49x128xf32>
      %40 = arith.subf %22, %39 : vector<49x128xf32>
      %c0_20 = arith.constant 0 : index
      %c0_21 = arith.constant 0 : index
      %41 = vector.load %arg5[%c0_20, %c0_21] : memref<1x128xf32, #tpu.memory_space<vmem>>, vector<1x128xf32>
      %42 = arith.mulf %38, %41 : vector<1x128xf32>
      %43 = vector.broadcast %42 : vector<1x128xf32> to vector<49x128xf32>
      %44 = arith.mulf %40, %43 : vector<49x128xf32>
      %c0_22 = arith.constant 0 : index
      %c0_23 = arith.constant 0 : index
      %45 = vector.load %arg6[%c0_22, %c0_23] : memref<1x128xf32, #tpu.memory_space<vmem>>, vector<1x128xf32>
      %46 = vector.broadcast %45 : vector<1x128xf32> to vector<49x128xf32>
      %47 = arith.addf %44, %46 : vector<49x128xf32>
      %c0_24 = arith.constant 0 : index
      %c0_25 = arith.constant 0 : index
      %48 = vector.load %arg7[%c0_24, %c0_25] : memref<49x128xf32, #tpu.memory_space<vmem>>, vector<49x128xf32>
      tpu.vector_store %arg7[%c0_24, %c0_25], %47 {strides = array<i32>} : memref<49x128xf32, #tpu.memory_space<vmem>>, vector<49x128xf32>,
    } else {
    }
    return
  }
  func.func @transform_0(%arg0: i32, %arg1: i32) -> (i32, i32) {
    %c0_i32 = arith.constant 0 : i32
    %c0_i32_0 = arith.constant 0 : i32
    return %c0_i32, %arg1 : i32, i32
  }
  func.func @transform_1(%arg0: i32, %arg1: i32) -> (i32, i32) {
    %c0_i32 = arith.constant 0 : i32
    %c0_i32_0 = arith.constant 0 : i32
    return %c0_i32, %arg1 : i32, i32
  }
  func.func @transform_2(%arg0: i32, %arg1: i32) -> (i32, i32) {
    %c0_i32 = arith.constant 0 : i32
    return %arg0, %arg1 : i32, i32
  }
  func.func @transform_3(%arg0: i32, %arg1: i32) -> (i32, i32) {
    %c0_i32 = arith.constant 0 : i32
    %c0_i32_0 = arith.constant 0 : i32
    return %c0_i32, %arg0 : i32, i32
  }
  func.func @transform_4(%arg0: i32, %arg1: i32) -> (i32, i32) {
    %c0_i32 = arith.constant 0 : i32
    %c0_i32_0 = arith.constant 0 : i32
    return %c0_i32, %arg0 : i32, i32
  }
  func.func @transform_5(%arg0: i32, %arg1: i32) -> (i32, i32) {
    %c0_i32 = arith.constant 0 : i32
    %c0_i32_0 = arith.constant 0 : i32
    return %c0_i32, %arg0 : i32, i32
  }
}

</mosaic_0001>

<llo_original>
// kernel: tpu_custom_call.1
$region0: #{tpu_custom_call.1}
  #allocation0 [shape = 'u32[]', space=smem, size = 0x4, offset = 0x4, fixed_abs, tag = 'smem constant byte address 0x4 - core index']
  #allocation1 [shape = 'u32[144,128]{1,0:T(1,128)}', space=vmem, size = 0x12000, scoped, tag = 'internal scratch']
  #allocation2 [shape = 'f32[49,128]{1,0:T(8,128)}', space=vmem, size = 0x7000, scoped, tag = 'scratch operand']
  %s0 = inlined_call_operand.hbm [shape: bf16[49,2304], index: 0, kind: input, shape index: {}]
  %s1 = inlined_call_operand.hbm [shape: f32[1,2304], index: 1, kind: input, shape index: {}]
  %s2 = inlined_call_operand.hbm [shape: bf16[384,2304], index: 2, kind: input, shape index: {}]
  %s3 = inlined_call_operand.hbm [shape: f32[1,384], index: 3, kind: input, shape index: {}]
  %s4 = inlined_call_operand.hbm [shape: f32[1,384], index: 4, kind: input, shape index: {}]
  %s5 = inlined_call_operand.hbm [shape: f32[49,384], index: 5, kind: output, shape index: {}]
  %s6 = sld [smem:[#allocation0]]
  $region81: #{tpu_custom_call.1} parent=0
    _
  %s8 = ssub.s32 1, %s6
  %s9 = scalar_select 0, %s8, %s6
  $region1: #{tpu_custom_call.1} parent=0
    #allocation3 [shape = 'u8[258048]{0}', space=vmem, size = 0x3f000, scoped, tag = 'input window, operand 0']
    #allocation4 [shape = 's32[2]{0}', space=sflag, size = 0x8, scoped, tag = 'scoped memory for tpu_custom_call.1']
    #allocation5 [shape = 's32[2]{0}', space=sflag, size = 0x8, scoped, tag = 'scoped memory for tpu_custom_call.1']
    #allocation6 [shape = 'u8[9216]{0}', space=vmem, size = 0x2400, scoped, tag = 'input window, operand 1']
    #allocation7 [shape = 's32[2]{0}', space=sflag, size = 0x8, scoped, tag = 'scoped memory for tpu_custom_call.1']
    #allocation8 [shape = 'u8[589824]{0}', space=vmem, size = 0x90000, scoped, tag = 'input window, operand 2']
    #allocation9 [shape = 'u8[1024]{0}', space=vmem, size = 0x400, scoped, tag = 'input window, operand 3']
    #allocation10 [shape = 's32[2]{0}', space=sflag, size = 0x8, scoped, tag = 'scoped memory for tpu_custom_call.1']
    #allocation11 [shape = 'u8[1024]{0}', space=vmem, size = 0x400, scoped, tag = 'input window, operand 4']
    #allocation12 [shape = 'u8[57344]{0}', space=vmem, size = 0xe000, scoped, tag = 'output window, operand 0']
    %10 = vsyncpa [#allocation4], 0
    %s11 = scalar_lea.sflag [#allocation4], 1
    %12 = vsyncpa %s11, 0
    %13 = vsyncpa [#allocation7], 0
    %s14 = scalar_lea.sflag [#allocation7], 1
    %15 = vsyncpa %s14, 0
    %16 = vsyncpa [#allocation10], 0
    %s17 = scalar_lea.sflag [#allocation10], 1
    %18 = vsyncpa %s17, 0
    %19 = vsyncpa [#allocation5], 0
    %s20 = scalar_lea.sflag [#allocation5], 1
    %21 = vsyncpa %s20, 0
    loop: start=0, step=1, limit=8
    $region2: #{tpu_custom_call.1} parent=1 // loop_pre_header
      _
    $region3: #{tpu_custom_call.1} parent=1 // loop_header
      %s23 = sphi 0, %s27
      %p24 = scmp.ge.s32.totalorder %s23, 8
      %s30 = sphi 0, %s42
      %s31 = sphi 0, %s38
      %s32 = sphi 0, %s30
      %s33 = sphi 0, %s31
      %s34 = sphi 0, %s32
      %s35 = sphi 0, %s33
      %s45 = sphi 0, %s47
      %s48 = sphi 0, %s45
      %s49 = sphi 0, %s48
      %s65 = sphi 0, %s49
      %s71 = sphi 0, %s73
      %s74 = sphi 0, %s71
      %s75 = sphi 0, %s74
      %s91 = sphi 0, %s75
      %s99 = sphi 0, %s101
      %s102 = sphi 0, %s99
      %s103 = sphi 0, %s102
      %s119 = sphi 0, %s103
      %s125 = sphi 0, %s127
      %s128 = sphi 0, %s125
      %s129 = sphi 0, %s128
      %s145 = sphi 0, %s129
      %s151 = sphi 0, %s153
      %s154 = sphi 0, %s151
      %s155 = sphi 0, %s154
      %s171 = sphi 0, %s155
      %s177 = sphi 0, %s179
      %s180 = sphi 0, %s177
      %s181 = sphi 0, %s180
      %s197 = sphi 0, %s181
    $region4: #{tpu_custom_call.1} parent=1 // loop_header_branch
      %26 = sbr.rel (%p24) target = $region8
    $region5: #{tpu_custom_call.1} parent=1 // loop_body
      %s28 = ssub.s32 %s23, 1
      %s29 = ssub.s32 %s23, 2
      %s36 = sadd.s32 1, %s31
      %p37 = scmp.ge.s32.totalorder %s36, 2
      %s38 = scalar_select %p37, 0, %s36
      %s39 = sadd.s32 1, %s30
      %s40 = scalar_select %p37, %s39, %s30
      %p41 = scmp.ge.s32.totalorder %s40, 3
      %s42 = scalar_select %p41, 0, %s40
      %s43 = ssub.s32 %s31, %s38
      %p44 = scmp.eq.s32.totalorder %s43, 0
      %s46 = sadd.s32 %s45, 1
      %s47 = scalar_select %p44, %s45, %s46
      %p50 = pneg %p44
      %p51 = scmp.eq.s32.totalorder %s23, 5
      %p52 = por %p50, %p51
      %p53 = scmp.ne.s32.totalorder %s45, %s48
      %p54 = scmp.eq.s32.totalorder %s23, 0
      %p55 = por %p53, %p54
      %p56 = scmp.ne.s32.totalorder %s45, %s48
      %p57 = scmp.eq.s32.totalorder %s28, 5
      %p58 = por %p56, %p57
      %p59 = scmp.ne.s32.totalorder %s48, %s49
      %p60 = scmp.eq.s32.totalorder %s28, 0
      %p61 = por %p59, %p60
      %p62 = scmp.ne.s32.totalorder %s48, %s49
      %p63 = scmp.eq.s32.totalorder %s29, 5
      %p64 = por %p62, %p63
      %p66 = scmp.ne.s32.totalorder %s49, %s65
      %p67 = scmp.eq.s32.totalorder %s29, 0
      %p68 = por %p66, %p67
      %s69 = ssub.s32 %s31, %s38
      %p70 = scmp.eq.s32.totalorder %s69, 0
      %s72 = sadd.s32 %s71, 1
      %s73 = scalar_select %p70, %s71, %s72
      %p76 = pneg %p70
      %p77 = scmp.eq.s32.totalorder %s23, 5
      %p78 = por %p76, %p77
      %p79 = scmp.ne.s32.totalorder %s71, %s74
      %p80 = scmp.eq.s32.totalorder %s23, 0
      %p81 = por %p79, %p80
      %p82 = scmp.ne.s32.totalorder %s71, %s74
      %p83 = scmp.eq.s32.totalorder %s28, 5
      %p84 = por %p82, %p83
      %p85 = scmp.ne.s32.totalorder %s74, %s75
      %p86 = scmp.eq.s32.totalorder %s28, 0
      %p87 = por %p85, %p86
      %p88 = scmp.ne.s32.totalorder %s74, %s75
      %p89 = scmp.eq.s32.totalorder %s29, 5
      %p90 = por %p88, %p89
      %p92 = scmp.ne.s32.totalorder %s75, %s91
      %p93 = scmp.eq.s32.totalorder %s29, 0
      %p94 = por %p92, %p93
      %s95 = ssub.s32 %s30, %s42
      %s96 = ssub.s32 %s31, %s38
      %s97 = sor.u32 %s95, %s96
      %p98 = scmp.eq.s32.totalorder %s97, 0
      %s100 = sadd.s32 %s99, 1
      %s101 = scalar_select %p98, %s99, %s100
      %p104 = pneg %p98
      %p105 = scmp.eq.s32.totalorder %s23, 5
      %p106 = por %p104, %p105
      %p107 = scmp.ne.s32.totalorder %s99, %s102
      %p108 = scmp.eq.s32.totalorder %s23, 0
      %p109 = por %p107, %p108
      %p110 = scmp.ne.s32.totalorder %s99, %s102
      %p111 = scmp.eq.s32.totalorder %s28, 5
      %p112 = por %p110, %p111
      %p113 = scmp.ne.s32.totalorder %s102, %s103
      %p114 = scmp.eq.s32.totalorder %s28, 0
      %p115 = por %p113, %p114
      %p116 = scmp.ne.s32.totalorder %s102, %s103
      %p117 = scmp.eq.s32.totalorder %s29, 5
      %p118 = por %p116, %p117
      %p120 = scmp.ne.s32.totalorder %s103, %s119
      %p121 = scmp.eq.s32.totalorder %s29, 0
      %p122 = por %p120, %p121
      %s123 = ssub.s32 %s30, %s42
      %p124 = scmp.eq.s32.totalorder %s123, 0
      %s126 = sadd.s32 %s125, 1
      %s127 = scalar_select %p124, %s125, %s126
      %p130 = pneg %p124
      %p131 = scmp.eq.s32.totalorder %s23, 5
      %p132 = por %p130, %p131
      %p133 = scmp.ne.s32.totalorder %s125, %s128
      %p134 = scmp.eq.s32.totalorder %s23, 0
      %p135 = por %p133, %p134
      %p136 = scmp.ne.s32.totalorder %s125, %s128
      %p137 = scmp.eq.s32.totalorder %s28, 5
      %p138 = por %p136, %p137
      %p139 = scmp.ne.s32.totalorder %s128, %s129
      %p140 = scmp.eq.s32.totalorder %s28, 0
      %p141 = por %p139, %p140
      %p142 = scmp.ne.s32.totalorder %s128, %s129
      %p143 = scmp.eq.s32.totalorder %s29, 5
      %p144 = por %p142, %p143
      %p146 = scmp.ne.s32.totalorder %s129, %s145
      %p147 = scmp.eq.s32.totalorder %s29, 0
      %p148 = por %p146, %p147
      %s149 = ssub.s32 %s30, %s42
      %p150 = scmp.eq.s32.totalorder %s149, 0
      %s152 = sadd.s32 %s151, 1
      %s153 = scalar_select %p150, %s151, %s152
      %p156 = pneg %p150
      %p157 = scmp.eq.s32.totalorder %s23, 5
      %p158 = por %p156, %p157
      %p159 = scmp.ne.s32.totalorder %s151, %s154
      %p160 = scmp.eq.s32.totalorder %s23, 0
      %p161 = por %p159, %p160
      %p162 = scmp.ne.s32.totalorder %s151, %s154
      %p163 = scmp.eq.s32.totalorder %s28, 5
      %p164 = por %p162, %p163
      %p165 = scmp.ne.s32.totalorder %s154, %s155
      %p166 = scmp.eq.s32.totalorder %s28, 0
      %p167 = por %p165, %p166
      %p168 = scmp.ne.s32.totalorder %s154, %s155
      %p169 = scmp.eq.s32.totalorder %s29, 5
      %p170 = por %p168, %p169
      %p172 = scmp.ne.s32.totalorder %s155, %s171
      %p173 = scmp.eq.s32.totalorder %s29, 0
      %p174 = por %p172, %p173
      %s175 = ssub.s32 %s30, %s42
      %p176 = scmp.eq.s32.totalorder %s175, 0
      %s178 = sadd.s32 %s177, 1
      %s179 = scalar_select %p176, %s177, %s178
      %p182 = pneg %p176
      %p183 = scmp.eq.s32.totalorder %s23, 5
      %p184 = por %p182, %p183
      %p185 = scmp.ne.s32.totalorder %s177, %s180
      %p186 = scmp.eq.s32.totalorder %s23, 0
      %p187 = por %p185, %p186
      %p188 = scmp.ne.s32.totalorder %s177, %s180
      %p189 = scmp.eq.s32.totalorder %s28, 5
      %p190 = por %p188, %p189
      %p191 = scmp.ne.s32.totalorder %s180, %s181
      %p192 = scmp.eq.s32.totalorder %s28, 0
      %p193 = por %p191, %p192
      %p194 = scmp.ne.s32.totalorder %s180, %s181
      %p195 = scmp.eq.s32.totalorder %s29, 5
      %p196 = por %p194, %p195
      %p198 = scmp.ne.s32.totalorder %s181, %s197
      %p199 = scmp.eq.s32.totalorder %s29, 0
      %p200 = por %p198, %p199
      %p201 = scmp.le.s32.totalorder 1, %s23
      %p202 = scmp.lt.s32.totalorder %s23, 7
      %p203 = pnand %p201, %p202
      %p204 = pneg %p203
      // Predicated region
      $region9: #{tpu_custom_call.1} parent=5 // pred_check
        _
      $region10: #{tpu_custom_call.1} parent=5 // pred_check_branch
        %206 = sbr.rel (%p203) target = $region12
      $region11: #{tpu_custom_call.1} parent=5 // pred_region
        %s207 = ssub.s32 %s23, 1
      $region12: #{tpu_custom_call.1} parent=5 // pred_fallthru
        _
      %p208 = scmp.lt.s32.totalorder %s23, 6
      // Predicated region
      $region13: #{tpu_custom_call.1} parent=5 // pred_check
        %p209 = pneg %p208
      $region14: #{tpu_custom_call.1} parent=5 // pred_check_branch
        %211 = sbr.rel (%p209) target = $region16
      $region15: #{tpu_custom_call.1} parent=5 // pred_region
        // Predicated region
        $region17: #{tpu_custom_call.1} parent=15 // pred_check
          %p212 = pneg %p55
        $region18: #{tpu_custom_call.1} parent=15 // pred_check_branch
          %214 = sbr.rel (%p212) target = $region20
        $region19: #{tpu_custom_call.1} parent=15 // pred_region
          %s215 = sand.u32 %s45, 1
          %s216 = scalar_lea.sflag [#allocation4], %s215
          %s217 = sand.u32 %s45, 1
          %s218 = smul.addr %s217, 252
          %s219 = scalar_lea.vmem [#allocation3], %s218
          %s220 = smul.u32 9, %s31
          %s222 = ssub.s32 4032, 4032
          %223 = vsyncadd %s216, %s222
          %s224 = smul.addr %s220, 64
          %s225 = scalar_lea.hbm %s0, %s224
          %s226 = sshll.u32 %s219, 4
          %s227 = int_to_ptr.vmem [resolvable:$true] %s226
          %232 = dma.hbm_to_vmem [thread:$0]  %s225, 4032, %s227, %s216, 1152, 576, 36
        $region20: #{tpu_custom_call.1} parent=15 // pred_fallthru
          _
        // Predicated region
        $region21: #{tpu_custom_call.1} parent=15 // pred_check
          %p233 = pneg %p81
        $region22: #{tpu_custom_call.1} parent=15 // pred_check_branch
          %235 = sbr.rel (%p233) target = $region24
        $region23: #{tpu_custom_call.1} parent=15 // pred_region
          %s236 = sand.u32 %s23, 1
          %s237 = scalar_lea.sflag [#allocation7], %s236
          %s238 = sand.u32 %s71, 1
          %s239 = smul.addr %s238, 9
          %s240 = scalar_lea.vmem [#allocation6], %s239
          %s241 = smul.u32 9, %s31
          %s243 = ssub.s32 144, 144
          %244 = vsyncadd %s237, %s243
          %s245 = smul.addr %s241, 16
          %s246 = scalar_lea.hbm %s1, %s245
          %s248 = sshll.u32 %s240, 4
          %s249 = int_to_ptr.vmem [resolvable:$true] %s248
          %251 = dma.hbm_to_vmem [thread:$0]  %s246, 144, %s249, %s237
        $region24: #{tpu_custom_call.1} parent=15 // pred_fallthru
          _
        // Predicated region
        $region25: #{tpu_custom_call.1} parent=15 // pred_check
          %p252 = pneg %p109
        $region26: #{tpu_custom_call.1} parent=15 // pred_check_branch
          %254 = sbr.rel (%p252) target = $region28
        $region27: #{tpu_custom_call.1} parent=15 // pred_region
          %s255 = sand.u32 %s23, 1
          %s256 = scalar_lea.sflag [#allocation7], %s255
          %s257 = sand.u32 %s99, 1
          %s258 = smul.addr %s257, 576
          %s259 = scalar_lea.vmem [#allocation8], %s258
          %s260 = smul.u32 16, %s30
          %s261 = smul.u32 9, %s31
          %s263 = ssub.s32 9216, 9216
          %264 = vsyncadd %s256, %s263
          %s265 = smul.addr %s260, 18
          %s266 = sadd.s32 %s261, %s265
          %s267 = smul.addr %s266, 64
          %s268 = scalar_lea.hbm %s2, %s267
          %s269 = sshll.u32 %s259, 4
          %s270 = int_to_ptr.vmem [resolvable:$true] %s269
          %275 = dma.hbm_to_vmem [thread:$0]  %s268, 9216, %s270, %s256, 1152, 576, 36
        $region28: #{tpu_custom_call.1} parent=15 // pred_fallthru
          _
        // Predicated region
        $region29: #{tpu_custom_call.1} parent=15 // pred_check
          %p276 = pneg %p135
        $region30: #{tpu_custom_call.1} parent=15 // pred_check_branch
          %278 = sbr.rel (%p276) target = $region32
        $region31: #{tpu_custom_call.1} parent=15 // pred_region
          %s279 = sand.u32 %s23, 1
          %s280 = scalar_lea.sflag [#allocation10], %s279
          %s281 = sand.u32 %s125, 1
          %s282 = scalar_lea.vmem [#allocation9], %s281
          %s284 = ssub.s32 16, 16
          %285 = vsyncadd %s280, %s284
          %s286 = smul.addr %s30, 16
          %s287 = scalar_lea.hbm %s3, %s286
          %s289 = sshll.u32 %s282, 4
          %s290 = int_to_ptr.vmem [resolvable:$true] %s289
          %292 = dma.hbm_to_vmem [thread:$0]  %s287, 16, %s290, %s280
        $region32: #{tpu_custom_call.1} parent=15 // pred_fallthru
          _
        // Predicated region
        $region33: #{tpu_custom_call.1} parent=15 // pred_check
          %p293 = pneg %p161
        $region34: #{tpu_custom_call.1} parent=15 // pred_check_branch
          %295 = sbr.rel (%p293) target = $region36
        $region35: #{tpu_custom_call.1} parent=15 // pred_region
          %s296 = sand.u32 %s23, 1
          %s297 = scalar_lea.sflag [#allocation10], %s296
          %s298 = sand.u32 %s151, 1
          %s299 = scalar_lea.vmem [#allocation11], %s298
          %s301 = ssub.s32 16, 16
          %302 = vsyncadd %s297, %s301
          %s303 = smul.addr %s30, 16
          %s304 = scalar_lea.hbm %s4, %s303
          %s306 = sshll.u32 %s299, 4
          %s307 = int_to_ptr.vmem [resolvable:$true] %s306
          %309 = dma.hbm_to_vmem [thread:$0]  %s304, 16, %s307, %s297
        $region36: #{tpu_custom_call.1} parent=15 // pred_fallthru
          _
      $region16: #{tpu_custom_call.1} parent=5 // pred_fallthru
        _
      %p310 = scmp.le.s32.totalorder 1, %s23
      %p311 = scmp.lt.s32.totalorder %s23, 7
      %p312 = pnand %p310, %p311
      %p313 = pneg %p312
      // Predicated region
      $region37: #{tpu_custom_call.1} parent=5 // pred_check
        _
      $region38: #{tpu_custom_call.1} parent=5 // pred_check_branch
        %315 = sbr.rel (%p312) target = $region40
      $region39: #{tpu_custom_call.1} parent=5 // pred_region
        %s316 = ssub.s32 %s23, 1
        %s317 = sand.u32 %s48, 1
        %s318 = scalar_lea.sflag [#allocation4], %s317
        %s319 = sand.u32 %s48, 1
        %s320 = smul.addr %s319, 252
        %s321 = scalar_lea.vmem [#allocation3], %s320
        // Predicated region
        $region41: #{tpu_custom_call.1} parent=39 // pred_check
          %p322 = pneg %p61
        $region42: #{tpu_custom_call.1} parent=39 // pred_check_branch
          %324 = sbr.rel (%p322) target = $region44
        $region43: #{tpu_custom_call.1} parent=39 // pred_region
          %325 = dma.done %s318, 4032
        $region44: #{tpu_custom_call.1} parent=39 // pred_fallthru
          _
        %s326 = sand.u32 %s28, 1
        %s327 = scalar_lea.sflag [#allocation7], %s326
        %s328 = sand.u32 %s74, 1
        %s329 = smul.addr %s328, 9
        %s330 = scalar_lea.vmem [#allocation6], %s329
        // Predicated region
        $region45: #{tpu_custom_call.1} parent=39 // pred_check
          %p331 = pneg %p87
        $region46: #{tpu_custom_call.1} parent=39 // pred_check_branch
          %333 = sbr.rel (%p331) target = $region48
        $region47: #{tpu_custom_call.1} parent=39 // pred_region
          %334 = dma.done %s327, 144
        $region48: #{tpu_custom_call.1} parent=39 // pred_fallthru
          _
        %s335 = sand.u32 %s28, 1
        %s336 = scalar_lea.sflag [#allocation7], %s335
        %s337 = sand.u32 %s102, 1
        %s338 = smul.addr %s337, 576
        %s339 = scalar_lea.vmem [#allocation8], %s338
        // Predicated region
        $region49: #{tpu_custom_call.1} parent=39 // pred_check
          %p340 = pneg %p115
        $region50: #{tpu_custom_call.1} parent=39 // pred_check_branch
          %342 = sbr.rel (%p340) target = $region52
        $region51: #{tpu_custom_call.1} parent=39 // pred_region
          %343 = dma.done %s336, 9216
        $region52: #{tpu_custom_call.1} parent=39 // pred_fallthru
          _
        %s344 = sand.u32 %s28, 1
        %s345 = scalar_lea.sflag [#allocation10], %s344
        %s346 = sand.u32 %s128, 1
        %s347 = scalar_lea.vmem [#allocation9], %s346
        // Predicated region
        $region53: #{tpu_custom_call.1} parent=39 // pred_check
          %p348 = pneg %p141
        $region54: #{tpu_custom_call.1} parent=39 // pred_check_branch
          %350 = sbr.rel (%p348) target = $region56
        $region55: #{tpu_custom_call.1} parent=39 // pred_region
          %351 = dma.done %s345, 16
        $region56: #{tpu_custom_call.1} parent=39 // pred_fallthru
          _
        %s352 = sand.u32 %s28, 1
        %s353 = scalar_lea.sflag [#allocation10], %s352
        %s354 = sand.u32 %s154, 1
        %s355 = scalar_lea.vmem [#allocation11], %s354
        // Predicated region
        $region57: #{tpu_custom_call.1} parent=39 // pred_check
          %p356 = pneg %p167
        $region58: #{tpu_custom_call.1} parent=39 // pred_check_branch
          %358 = sbr.rel (%p356) target = $region60
        $region59: #{tpu_custom_call.1} parent=39 // pred_region
          %359 = dma.done %s353, 16
        $region60: #{tpu_custom_call.1} parent=39 // pred_fallthru
          _
        %s360 = sand.u32 %s48, 1
        %s361 = scalar_lea.sflag [#allocation4], %s360
        %s362 = sand.u32 %s48, 1
        %s363 = smul.addr %s362, 252
        %s364 = scalar_lea.vmem [#allocation3], %s363
        %p365 = pneg %p61
        %p366 = pneg %p58
        %s367 = sand.u32 %s28, 1
        %s368 = scalar_lea.sflag [#allocation7], %s367
        %s369 = sand.u32 %s74, 1
        %s370 = smul.addr %s369, 9
        %s371 = scalar_lea.vmem [#allocation6], %s370
        %p372 = pneg %p87
        %p373 = pneg %p84
        %s374 = sand.u32 %s28, 1
        %s375 = scalar_lea.sflag [#allocation7], %s374
        %s376 = sand.u32 %s102, 1
        %s377 = smul.addr %s376, 576
        %s378 = scalar_lea.vmem [#allocation8], %s377
        %p379 = pneg %p115
        %p380 = pneg %p112
        %s381 = sand.u32 %s28, 1
        %s382 = scalar_lea.sflag [#allocation10], %s381
        %s383 = sand.u32 %s128, 1
        %s384 = scalar_lea.vmem [#allocation9], %s383
        %p385 = pneg %p141
        %p386 = pneg %p138
        %s387 = sand.u32 %s28, 1
        %s388 = scalar_lea.sflag [#allocation10], %s387
        %s389 = sand.u32 %s154, 1
        %s390 = scalar_lea.vmem [#allocation11], %s389
        %p391 = pneg %p167
        %p392 = pneg %p164
        %p393 = pneg %p193
        %p394 = pneg %p190
        %s395 = sand.u32 %s180, 1
        %s396 = scalar_lea.sflag [#allocation5], %s395
        %s397 = sand.u32 %s180, 1
        %s398 = smul.addr %s397, 56
        %s399 = scalar_lea.vmem [#allocation12], %s398
        %s400 = smul.u32 9, %s33
        %s401 = smul.u32 9, %s33
        %s402 = smul.u32 16, %s32
        %s403 = smul.u32 9, %s33
        %p405 = scmp.eq.s32.totalorder %s33, 0
        // Predicated region
        $region61: #{tpu_custom_call.1} parent=39 // pred_check
          %p406 = pneg %p405
        $region62: #{tpu_custom_call.1} parent=39 // pred_check_branch
          %408 = sbr.rel (%p406) target = $region64
        $region63: #{tpu_custom_call.1} parent=39 // pred_region
          %409 = vst [vmem:[#allocation2] sm:$0xff] 0.0
          %410 = vst [vmem:[#allocation2 + $0x8] sm:$0xff] 0.0
          %411 = vst [vmem:[#allocation2 + $0x10] sm:$0xff] 0.0
          %412 = vst [vmem:[#allocation2 + $0x18] sm:$0xff] 0.0
          %413 = vst [vmem:[#allocation2 + $0x20] sm:$0xff] 0.0
          %414 = vst [vmem:[#allocation2 + $0x28] sm:$0xff] 0.0
          %415 = vst [vmem:[#allocation2 + $0x30] sm:$0x1] 0.0
        $region64: #{tpu_custom_call.1} parent=39 // pred_fallthru
          _
        %v416 = vld [vmem:[%s330] sm:$0xff]
        %v417 = vld [vmem:[%s330 + $0x8] sm:$0x1]
        %v418 = vxor.u32 %v416, 2147483648
        %v419 = vxor.u32 %v417, 2147483648
        %v420 = vmul.f32 %v418, 1.442695
        %v421 = vpow.pop %v420
        %v422 = vmul.f32 %v419, 1.442695
        %v423 = vpow.pop %v422
        %v424 = vadd.f32 %v421, 1.0
        %v425 = vadd.f32 %v423, 1.0
        %v426 = vrcp.pop %v424
        %v427 = vmul.f32 1.0, %v426
        %v428 = vrcp.pop %v425
        %v429 = vmul.f32 1.0, %v428
        %v430 = vld [vmem:[%s321] sm:$0xff]
        %v431 = vld [vmem:[%s321 + $0x8] sm:$0xff]
        %v432 = vld [vmem:[%s321 + $0x10] sm:$0xff]
        %v433 = vld [vmem:[%s321 + $0x18] sm:$0xff]
        %v434 = vld [vmem:[%s321 + $0x20] sm:$0xf]
        %v435 = vld [vmem:[%s321 + $0x24] sm:$0xff]
        %v436 = vld [vmem:[%s321 + $0x2c] sm:$0xff]
        %v437 = vld [vmem:[%s321 + $0x34] sm:$0xff]
        %v438 = vld [vmem:[%s321 + $0x3c] sm:$0xff]
        %v439 = vld [vmem:[%s321 + $0x44] sm:$0xf]
        %v440 = vld [vmem:[%s321 + $0x48] sm:$0xff]
        %v441 = vld [vmem:[%s321 + $0x50] sm:$0xff]
        %v442 = vld [vmem:[%s321 + $0x58] sm:$0xff]
        %v443 = vld [vmem:[%s321 + $0x60] sm:$0xff]
        %v444 = vld [vmem:[%s321 + $0x68] sm:$0xf]
        %v445 = vld [vmem:[%s321 + $0x6c] sm:$0xff]
        %v446 = vld [vmem:[%s321 + $0x74] sm:$0xff]
        %v447 = vld [vmem:[%s321 + $0x7c] sm:$0xff]
        %v448 = vld [vmem:[%s321 + $0x84] sm:$0xff]
        %v449 = vld [vmem:[%s321 + $0x8c] sm:$0xf]
        %v450 = vld [vmem:[%s321 + $0x90] sm:$0xff]
        %v451 = vld [vmem:[%s321 + $0x98] sm:$0xff]
        %v452 = vld [vmem:[%s321 + $0xa0] sm:$0xff]
        %v453 = vld [vmem:[%s321 + $0xa8] sm:$0xff]
        %v454 = vld [vmem:[%s321 + $0xb0] sm:$0xf]
        %v455 = vld [vmem:[%s321 + $0xb4] sm:$0xff]
        %v456 = vld [vmem:[%s321 + $0xbc] sm:$0xff]
        %v457 = vld [vmem:[%s321 + $0xc4] sm:$0xff]
        %v458 = vld [vmem:[%s321 + $0xcc] sm:$0xff]
        %v459 = vld [vmem:[%s321 + $0xd4] sm:$0xf]
        %v460 = vld [vmem:[%s321 + $0xd8] sm:$0x11]
        %v461 = vld [vmem:[%s321 + $0xe0] sm:$0x11]
        %v462 = vld [vmem:[%s321 + $0xe8] sm:$0x11]
        %v463 = vld [vmem:[%s321 + $0xf0] sm:$0x11]
        %v464 = vld [vmem:[%s321 + $0xf8] sm:$0x1]
        %v465 = vunpack.c.l.bf16 %v430
        %v466 = vunpack.c.h.bf16 %v430
        %v467 = vunpack.c.l.bf16 %v431
        %v468 = vunpack.c.h.bf16 %v431
        %v469 = vunpack.c.l.bf16 %v432
        %v470 = vunpack.c.h.bf16 %v432
        %v471 = vunpack.c.l.bf16 %v433
        %v472 = vunpack.c.h.bf16 %v433
        %v473 = vunpack.c.l.bf16 %v434
        %v474 = vunpack.c.l.bf16 %v435
        %v475 = vunpack.c.h.bf16 %v435
        %v476 = vunpack.c.l.bf16 %v436
        %v477 = vunpack.c.h.bf16 %v436
        %v478 = vunpack.c.l.bf16 %v437
        %v479 = vunpack.c.h.bf16 %v437
        %v480 = vunpack.c.l.bf16 %v438
        %v481 = vunpack.c.h.bf16 %v438
        %v482 = vunpack.c.l.bf16 %v439
        %v483 = vunpack.c.l.bf16 %v440
        %v484 = vunpack.c.h.bf16 %v440
        %v485 = vunpack.c.l.bf16 %v441
        %v486 = vunpack.c.h.bf16 %v441
        %v487 = vunpack.c.l.bf16 %v442
        %v488 = vunpack.c.h.bf16 %v442
        %v489 = vunpack.c.l.bf16 %v443
        %v490 = vunpack.c.h.bf16 %v443
        %v491 = vunpack.c.l.bf16 %v444
        %v492 = vunpack.c.l.bf16 %v445
        %v493 = vunpack.c.h.bf16 %v445
        %v494 = vunpack.c.l.bf16 %v446
        %v495 = vunpack.c.h.bf16 %v446
        %v496 = vunpack.c.l.bf16 %v447
        %v497 = vunpack.c.h.bf16 %v447
        %v498 = vunpack.c.l.bf16 %v448
        %v499 = vunpack.c.h.bf16 %v448
        %v500 = vunpack.c.l.bf16 %v449
        %v501 = vunpack.c.l.bf16 %v450
        %v502 = vunpack.c.h.bf16 %v450
        %v503 = vunpack.c.l.bf16 %v451
        %v504 = vunpack.c.h.bf16 %v451
        %v505 = vunpack.c.l.bf16 %v452
        %v506 = vunpack.c.h.bf16 %v452
        %v507 = vunpack.c.l.bf16 %v453
        %v508 = vunpack.c.h.bf16 %v453
        %v509 = vunpack.c.l.bf16 %v454
        %v510 = vunpack.c.l.bf16 %v455
        %v511 = vunpack.c.h.bf16 %v455
        %v512 = vunpack.c.l.bf16 %v456
        %v513 = vunpack.c.h.bf16 %v456
        %v514 = vunpack.c.l.bf16 %v457
        %v515 = vunpack.c.h.bf16 %v457
        %v516 = vunpack.c.l.bf16 %v458
        %v517 = vunpack.c.h.bf16 %v458
        %v518 = vunpack.c.l.bf16 %v459
        %v519 = vunpack.c.l.bf16 %v460
        %v520 = vunpack.c.h.bf16 %v460
        %v521 = vunpack.c.l.bf16 %v461
        %v522 = vunpack.c.h.bf16 %v461
        %v523 = vunpack.c.l.bf16 %v462
        %v524 = vunpack.c.h.bf16 %v462
        %v525 = vunpack.c.l.bf16 %v463
        %v526 = vunpack.c.h.bf16 %v463
        %v527 = vunpack.c.l.bf16 %v464
        %v530 = vlaneseq
        %v531 = vshrl.u32 %v530, 7
        %v532 = vsub.s32 0, %v531
        %v533 = vrot.slane %v427, %v532
        %v534 = vlaneseq
        %v535 = vshrl.u32 %v534, 7
        %v536 = vsub.s32 1, %v535
        %v537 = vrot.slane %v427, %v536
        %v538 = vlaneseq
        %v539 = vshrl.u32 %v538, 7
        %v540 = vsub.s32 2, %v539
        %v541 = vrot.slane %v427, %v540
        %v542 = vlaneseq
        %v543 = vshrl.u32 %v542, 7
        %v544 = vsub.s32 3, %v543
        %v545 = vrot.slane %v427, %v544
        %v546 = vlaneseq
        %v547 = vshrl.u32 %v546, 7
        %v548 = vsub.s32 4, %v547
        %v549 = vrot.slane %v427, %v548
        %v550 = vlaneseq
        %v551 = vshrl.u32 %v550, 7
        %v552 = vsub.s32 5, %v551
        %v553 = vrot.slane %v427, %v552
        %v554 = vlaneseq
        %v555 = vshrl.u32 %v554, 7
        %v556 = vsub.s32 6, %v555
        %v557 = vrot.slane %v427, %v556
        %v558 = vlaneseq
        %v559 = vshrl.u32 %v558, 7
        %v560 = vsub.s32 7, %v559
        %v561 = vrot.slane %v427, %v560
        %v562 = vlaneseq
        %v563 = vshrl.u32 %v562, 7
        %v564 = vsub.s32 0, %v563
        %v565 = vrot.slane %v429, %v564
        %v575 = vmul.f32 %v465, %v533
        %v576 = vmul.f32 %v466, %v537
        %v577 = vmul.f32 %v467, %v541
        %v578 = vmul.f32 %v468, %v545
        %v579 = vmul.f32 %v469, %v549
        %v580 = vmul.f32 %v470, %v553
        %v581 = vmul.f32 %v471, %v557
        %v582 = vmul.f32 %v472, %v561
        %v583 = vmul.f32 %v473, %v565
        %v584 = vmul.f32 %v474, %v533
        %v585 = vmul.f32 %v475, %v537
        %v586 = vmul.f32 %v476, %v541
        %v587 = vmul.f32 %v477, %v545
        %v588 = vmul.f32 %v478, %v549
        %v589 = vmul.f32 %v479, %v553
        %v590 = vmul.f32 %v480, %v557
        %v591 = vmul.f32 %v481, %v561
        %v592 = vmul.f32 %v482, %v565
        %v593 = vmul.f32 %v483, %v533
        %v594 = vmul.f32 %v484, %v537
        %v595 = vmul.f32 %v485, %v541
        %v596 = vmul.f32 %v486, %v545
        %v597 = vmul.f32 %v487, %v549
        %v598 = vmul.f32 %v488, %v553
        %v599 = vmul.f32 %v489, %v557
        %v600 = vmul.f32 %v490, %v561
        %v601 = vmul.f32 %v491, %v565
        %v602 = vmul.f32 %v492, %v533
        %v603 = vmul.f32 %v493, %v537
        %v604 = vmul.f32 %v494, %v541
        %v605 = vmul.f32 %v495, %v545
        %v606 = vmul.f32 %v496, %v549
        %v607 = vmul.f32 %v497, %v553
        %v608 = vmul.f32 %v498, %v557
        %v609 = vmul.f32 %v499, %v561
        %v610 = vmul.f32 %v500, %v565
        %v611 = vmul.f32 %v501, %v533
        %v612 = vmul.f32 %v502, %v537
        %v613 = vmul.f32 %v503, %v541
        %v614 = vmul.f32 %v504, %v545
        %v615 = vmul.f32 %v505, %v549
        %v616 = vmul.f32 %v506, %v553
        %v617 = vmul.f32 %v507, %v557
        %v618 = vmul.f32 %v508, %v561
        %v619 = vmul.f32 %v509, %v565
        %v620 = vmul.f32 %v510, %v533
        %v621 = vmul.f32 %v511, %v537
        %v622 = vmul.f32 %v512, %v541
        %v623 = vmul.f32 %v513, %v545
        %v624 = vmul.f32 %v514, %v549
        %v625 = vmul.f32 %v515, %v553
        %v626 = vmul.f32 %v516, %v557
        %v627 = vmul.f32 %v517, %v561
        %v628 = vmul.f32 %v518, %v565
        %v629 = vmul.f32 %v519, %v533
        %v630 = vmul.f32 %v520, %v537
        %v631 = vmul.f32 %v521, %v541
        %v632 = vmul.f32 %v522, %v545
        %v633 = vmul.f32 %v523, %v549
        %v634 = vmul.f32 %v524, %v553
        %v635 = vmul.f32 %v525, %v557
        %v636 = vmul.f32 %v526, %v561
        %v637 = vmul.f32 %v527, %v565
        %v638 = vpack.c.bf16 %v584, %v575
        %v639 = vpack.c.bf16 %v585, %v576
        %v640 = vpack.c.bf16 %v586, %v577
        %v641 = vpack.c.bf16 %v587, %v578
        %v642 = vpack.c.bf16 %v588, %v579
        %v643 = vpack.c.bf16 %v589, %v580
        %v644 = vpack.c.bf16 %v590, %v581
        %v645 = vpack.c.bf16 %v591, %v582
        %v646 = vpack.c.bf16 %v592, %v583
        %v647 = vpack.c.bf16 %v602, %v593
        %v648 = vpack.c.bf16 %v603, %v594
        %v649 = vpack.c.bf16 %v604, %v595
        %v650 = vpack.c.bf16 %v605, %v596
        %v651 = vpack.c.bf16 %v606, %v597
        %v652 = vpack.c.bf16 %v607, %v598
        %v653 = vpack.c.bf16 %v608, %v599
        %v654 = vpack.c.bf16 %v609, %v600
        %v655 = vpack.c.bf16 %v610, %v601
        %v656 = vpack.c.bf16 %v620, %v611
        %v657 = vpack.c.bf16 %v621, %v612
        %v658 = vpack.c.bf16 %v622, %v613
        %v659 = vpack.c.bf16 %v623, %v614
        %v660 = vpack.c.bf16 %v624, %v615
        %v661 = vpack.c.bf16 %v625, %v616
        %v662 = vpack.c.bf16 %v626, %v617
        %v663 = vpack.c.bf16 %v627, %v618
        %v664 = vpack.c.bf16 %v628, %v619
        %v665 = vpack.c.bf16 %v629, %v629
        %v666 = vpack.c.bf16 %v630, %v630
        %v667 = vpack.c.bf16 %v631, %v631
        %v668 = vpack.c.bf16 %v632, %v632
        %v669 = vpack.c.bf16 %v633, %v633
        %v670 = vpack.c.bf16 %v634, %v634
        %v671 = vpack.c.bf16 %v635, %v635
        %v672 = vpack.c.bf16 %v636, %v636
        %v673 = vpack.c.bf16 %v637, %v637
        %v674 = vld [vmem:[#allocation2] sm:$0xff]
        %v675 = vld [vmem:[#allocation2 + $0x8] sm:$0xff]
        %v676 = vld [vmem:[#allocation2 + $0x10] sm:$0xff]
        %v677 = vld [vmem:[#allocation2 + $0x18] sm:$0xff]
        %v678 = vld [vmem:[#allocation2 + $0x20] sm:$0xff]
        %v679 = vld [vmem:[#allocation2 + $0x28] sm:$0xff]
        %v680 = vld [vmem:[#allocation2 + $0x30] sm:$0x1]
        %v681 = vld [vmem:[%s339] sm:$0xff]
        %v682 = vld [vmem:[%s339 + $0x8] sm:$0xff]
        %v683 = vld [vmem:[%s339 + $0x10] sm:$0xff]
        %v684 = vld [vmem:[%s339 + $0x18] sm:$0xff]
        %v685 = vld [vmem:[%s339 + $0x20] sm:$0xf]
        %v686 = vld [vmem:[%s339 + $0x24] sm:$0xff]
        %v687 = vld [vmem:[%s339 + $0x2c] sm:$0xff]
        %v688 = vld [vmem:[%s339 + $0x34] sm:$0xff]
        %v689 = vld [vmem:[%s339 + $0x3c] sm:$0xff]
        %v690 = vld [vmem:[%s339 + $0x44] sm:$0xf]
        %v691 = vld [vmem:[%s339 + $0x48] sm:$0xff]
        %v692 = vld [vmem:[%s339 + $0x50] sm:$0xff]
        %v693 = vld [vmem:[%s339 + $0x58] sm:$0xff]
        %v694 = vld [vmem:[%s339 + $0x60] sm:$0xff]
        %v695 = vld [vmem:[%s339 + $0x68] sm:$0xf]
        %v696 = vld [vmem:[%s339 + $0x6c] sm:$0xff]
        %v697 = vld [vmem:[%s339 + $0x74] sm:$0xff]
        %v698 = vld [vmem:[%s339 + $0x7c] sm:$0xff]
        %v699 = vld [vmem:[%s339 + $0x84] sm:$0xff]
        %v700 = vld [vmem:[%s339 + $0x8c] sm:$0xf]
        %v701 = vld [vmem:[%s339 + $0x90] sm:$0xff]
        %v702 = vld [vmem:[%s339 + $0x98] sm:$0xff]
        %v703 = vld [vmem:[%s339 + $0xa0] sm:$0xff]
        %v704 = vld [vmem:[%s339 + $0xa8] sm:$0xff]
        %v705 = vld [vmem:[%s339 + $0xb0] sm:$0xf]
        %v706 = vld [vmem:[%s339 + $0xb4] sm:$0xff]
        %v707 = vld [vmem:[%s339 + $0xbc] sm:$0xff]
        %v708 = vld [vmem:[%s339 + $0xc4] sm:$0xff]
        %v709 = vld [vmem:[%s339 + $0xcc] sm:$0xff]
        %v710 = vld [vmem:[%s339 + $0xd4] sm:$0xf]
        %v711 = vld [vmem:[%s339 + $0xd8] sm:$0xff]
        %v712 = vld [vmem:[%s339 + $0xe0] sm:$0xff]
        %v713 = vld [vmem:[%s339 + $0xe8] sm:$0xff]
        %v714 = vld [vmem:[%s339 + $0xf0] sm:$0xff]
        %v715 = vld [vmem:[%s339 + $0xf8] sm:$0xf]
        %v716 = vld [vmem:[%s339 + $0xfc] sm:$0xff]
        %v717 = vld [vmem:[%s339 + $0x104] sm:$0xff]
        %v718 = vld [vmem:[%s339 + $0x10c] sm:$0xff]
        %v719 = vld [vmem:[%s339 + $0x114] sm:$0xff]
        %v720 = vld [vmem:[%s339 + $0x11c] sm:$0xf]
        %v721 = vld [vmem:[%s339 + $0x120] sm:$0xff]
        %v722 = vld [vmem:[%s339 + $0x128] sm:$0xff]
        %v723 = vld [vmem:[%s339 + $0x130] sm:$0xff]
        %v724 = vld [vmem:[%s339 + $0x138] sm:$0xff]
        %v725 = vld [vmem:[%s339 + $0x140] sm:$0xf]
        %v726 = vld [vmem:[%s339 + $0x144] sm:$0xff]
        %v727 = vld [vmem:[%s339 + $0x14c] sm:$0xff]
        %v728 = vld [vmem:[%s339 + $0x154] sm:$0xff]
        %v729 = vld [vmem:[%s339 + $0x15c] sm:$0xff]
        %v730 = vld [vmem:[%s339 + $0x164] sm:$0xf]
        %v731 = vld [vmem:[%s339 + $0x168] sm:$0xff]
        %v732 = vld [vmem:[%s339 + $0x170] sm:$0xff]
        %v733 = vld [vmem:[%s339 + $0x178] sm:$0xff]
        %v734 = vld [vmem:[%s339 + $0x180] sm:$0xff]
        %v735 = vld [vmem:[%s339 + $0x188] sm:$0xf]
        %v736 = vld [vmem:[%s339 + $0x18c] sm:$0xff]
        %v737 = vld [vmem:[%s339 + $0x194] sm:$0xff]
        %v738 = vld [vmem:[%s339 + $0x19c] sm:$0xff]
        %v739 = vld [vmem:[%s339 + $0x1a4] sm:$0xff]
        %v740 = vld [vmem:[%s339 + $0x1ac] sm:$0xf]
        %v741 = vld [vmem:[%s339 + $0x1b0] sm:$0xff]
        %v742 = vld [vmem:[%s339 + $0x1b8] sm:$0xff]
        %v743 = vld [vmem:[%s339 + $0x1c0] sm:$0xff]
        %v744 = vld [vmem:[%s339 + $0x1c8] sm:$0xff]
        %v745 = vld [vmem:[%s339 + $0x1d0] sm:$0xf]
        %v746 = vld [vmem:[%s339 + $0x1d4] sm:$0xff]
        %v747 = vld [vmem:[%s339 + $0x1dc] sm:$0xff]
        %v748 = vld [vmem:[%s339 + $0x1e4] sm:$0xff]
        %v749 = vld [vmem:[%s339 + $0x1ec] sm:$0xff]
        %v750 = vld [vmem:[%s339 + $0x1f4] sm:$0xf]
        %v751 = vld [vmem:[%s339 + $0x1f8] sm:$0xff]
        %v752 = vld [vmem:[%s339 + $0x200] sm:$0xff]
        %v753 = vld [vmem:[%s339 + $0x208] sm:$0xff]
        %v754 = vld [vmem:[%s339 + $0x210] sm:$0xff]
        %v755 = vld [vmem:[%s339 + $0x218] sm:$0xf]
        %v756 = vld [vmem:[%s339 + $0x21c] sm:$0xff]
        %v757 = vld [vmem:[%s339 + $0x224] sm:$0xff]
        %v758 = vld [vmem:[%s339 + $0x22c] sm:$0xff]
        %v759 = vld [vmem:[%s339 + $0x234] sm:$0xff]
        %v760 = vld [vmem:[%s339 + $0x23c] sm:$0xf]
        %v841 = vunpack.c.l.b16 %v681
        %v842 = vunpack.c.h.b16 %v681
        %v843 = vunpack.c.l.b16 %v682
        %v844 = vunpack.c.h.b16 %v682
        %v845 = vunpack.c.l.b16 %v683
        %v846 = vunpack.c.h.b16 %v683
        %v847 = vunpack.c.l.b16 %v684
        %v848 = vunpack.c.h.b16 %v684
        %v849 = vunpack.c.l.b16 %v685
        %v850 = vunpack.c.l.b16 %v686
        %v851 = vunpack.c.h.b16 %v686
        %v852 = vunpack.c.l.b16 %v687
        %v853 = vunpack.c.h.b16 %v687
        %v854 = vunpack.c.l.b16 %v688
        %v855 = vunpack.c.h.b16 %v688
        %v856 = vunpack.c.l.b16 %v689
        %v857 = vunpack.c.h.b16 %v689
        %v858 = vunpack.c.l.b16 %v690
        %v859 = vunpack.c.l.b16 %v691
        %v860 = vunpack.c.h.b16 %v691
        %v861 = vunpack.c.l.b16 %v692
        %v862 = vunpack.c.h.b16 %v692
        %v863 = vunpack.c.l.b16 %v693
        %v864 = vunpack.c.h.b16 %v693
        %v865 = vunpack.c.l.b16 %v694
        %v866 = vunpack.c.h.b16 %v694
        %v867 = vunpack.c.l.b16 %v695
        %v868 = vunpack.c.l.b16 %v696
        %v869 = vunpack.c.h.b16 %v696
        %v870 = vunpack.c.l.b16 %v697
        %v871 = vunpack.c.h.b16 %v697
        %v872 = vunpack.c.l.b16 %v698
        %v873 = vunpack.c.h.b16 %v698
        %v874 = vunpack.c.l.b16 %v699
        %v875 = vunpack.c.h.b16 %v699
        %v876 = vunpack.c.l.b16 %v700
        %v877 = vunpack.c.l.b16 %v701
        %v878 = vunpack.c.h.b16 %v701
        %v879 = vunpack.c.l.b16 %v702
        %v880 = vunpack.c.h.b16 %v702
        %v881 = vunpack.c.l.b16 %v703
        %v882 = vunpack.c.h.b16 %v703
        %v883 = vunpack.c.l.b16 %v704
        %v884 = vunpack.c.h.b16 %v704
        %v885 = vunpack.c.l.b16 %v705
        %v886 = vunpack.c.l.b16 %v706
        %v887 = vunpack.c.h.b16 %v706
        %v888 = vunpack.c.l.b16 %v707
        %v889 = vunpack.c.h.b16 %v707
        %v890 = vunpack.c.l.b16 %v708
        %v891 = vunpack.c.h.b16 %v708
        %v892 = vunpack.c.l.b16 %v709
        %v893 = vunpack.c.h.b16 %v709
        %v894 = vunpack.c.l.b16 %v710
        %v895 = vunpack.c.l.b16 %v711
        %v896 = vunpack.c.h.b16 %v711
        %v897 = vunpack.c.l.b16 %v712
        %v898 = vunpack.c.h.b16 %v712
        %v899 = vunpack.c.l.b16 %v713
        %v900 = vunpack.c.h.b16 %v713
        %v901 = vunpack.c.l.b16 %v714
        %v902 = vunpack.c.h.b16 %v714
        %v903 = vunpack.c.l.b16 %v715
        %v904 = vunpack.c.l.b16 %v716
        %v905 = vunpack.c.h.b16 %v716
        %v906 = vunpack.c.l.b16 %v717
        %v907 = vunpack.c.h.b16 %v717
        %v908 = vunpack.c.l.b16 %v718
        %v909 = vunpack.c.h.b16 %v718
        %v910 = vunpack.c.l.b16 %v719
        %v911 = vunpack.c.h.b16 %v719
        %v912 = vunpack.c.l.b16 %v720
        %v913 = vunpack.c.l.b16 %v721
        %v914 = vunpack.c.h.b16 %v721
        %v915 = vunpack.c.l.b16 %v722
        %v916 = vunpack.c.h.b16 %v722
        %v917 = vunpack.c.l.b16 %v723
        %v918 = vunpack.c.h.b16 %v723
        %v919 = vunpack.c.l.b16 %v724
        %v920 = vunpack.c.h.b16 %v724
        %v921 = vunpack.c.l.b16 %v725
        %v922 = vunpack.c.l.b16 %v726
        %v923 = vunpack.c.h.b16 %v726
        %v924 = vunpack.c.l.b16 %v727
        %v925 = vunpack.c.h.b16 %v727
        %v926 = vunpack.c.l.b16 %v728
        %v927 = vunpack.c.h.b16 %v728
        %v928 = vunpack.c.l.b16 %v729
        %v929 = vunpack.c.h.b16 %v729
        %v930 = vunpack.c.l.b16 %v730
        %v931 = vunpack.c.l.b16 %v731
        %v932 = vunpack.c.h.b16 %v731
        %v933 = vunpack.c.l.b16 %v732
        %v934 = vunpack.c.h.b16 %v732
        %v935 = vunpack.c.l.b16 %v733
        %v936 = vunpack.c.h.b16 %v733
        %v937 = vunpack.c.l.b16 %v734
        %v938 = vunpack.c.h.b16 %v734
        %v939 = vunpack.c.l.b16 %v735
        %v940 = vunpack.c.l.b16 %v736
        %v941 = vunpack.c.h.b16 %v736
        %v942 = vunpack.c.l.b16 %v737
        %v943 = vunpack.c.h.b16 %v737
        %v944 = vunpack.c.l.b16 %v738
        %v945 = vunpack.c.h.b16 %v738
        %v946 = vunpack.c.l.b16 %v739
        %v947 = vunpack.c.h.b16 %v739
        %v948 = vunpack.c.l.b16 %v740
        %v949 = vunpack.c.l.b16 %v741
        %v950 = vunpack.c.h.b16 %v741
        %v951 = vunpack.c.l.b16 %v742
        %v952 = vunpack.c.h.b16 %v742
        %v953 = vunpack.c.l.b16 %v743
        %v954 = vunpack.c.h.b16 %v743
        %v955 = vunpack.c.l.b16 %v744
        %v956 = vunpack.c.h.b16 %v744
        %v957 = vunpack.c.l.b16 %v745
        %v958 = vunpack.c.l.b16 %v746
        %v959 = vunpack.c.h.b16 %v746
        %v960 = vunpack.c.l.b16 %v747
        %v961 = vunpack.c.h.b16 %v747
        %v962 = vunpack.c.l.b16 %v748
        %v963 = vunpack.c.h.b16 %v748
        %v964 = vunpack.c.l.b16 %v749
        %v965 = vunpack.c.h.b16 %v749
        %v966 = vunpack.c.l.b16 %v750
        %v967 = vunpack.c.l.b16 %v751
        %v968 = vunpack.c.h.b16 %v751
        %v969 = vunpack.c.l.b16 %v752
        %v970 = vunpack.c.h.b16 %v752
        %v971 = vunpack.c.l.b16 %v753
        %v972 = vunpack.c.h.b16 %v753
        %v973 = vunpack.c.l.b16 %v754
        %v974 = vunpack.c.h.b16 %v754
        %v975 = vunpack.c.l.b16 %v755
        %v976 = vunpack.c.l.b16 %v756
        %v977 = vunpack.c.h.b16 %v756
        %v978 = vunpack.c.l.b16 %v757
        %v979 = vunpack.c.h.b16 %v757
        %v980 = vunpack.c.l.b16 %v758
        %v981 = vunpack.c.h.b16 %v758
        %v982 = vunpack.c.l.b16 %v759
        %v983 = vunpack.c.h.b16 %v759
        %v984 = vunpack.c.l.b16 %v760
        %v985 = vpack.c.b16 %v850, %v841
        %v986 = vpack.c.b16 %v851, %v842
        %v987 = vpack.c.b16 %v852, %v843
        %v988 = vpack.c.b16 %v853, %v844
        %v989 = vpack.c.b16 %v854, %v845
        %v990 = vpack.c.b16 %v855, %v846
        %v991 = vpack.c.b16 %v856, %v847
        %v992 = vpack.c.b16 %v857, %v848
        %v993 = vpack.c.b16 %v858, %v849
        %v994 = vpack.c.b16 %v868, %v859
        %v995 = vpack.c.b16 %v869, %v860
        %v996 = vpack.c.b16 %v870, %v861
        %v997 = vpack.c.b16 %v871, %v862
        %v998 = vpack.c.b16 %v872, %v863
        %v999 = vpack.c.b16 %v873, %v864
        %v1000 = vpack.c.b16 %v874, %v865
        %v1001 = vpack.c.b16 %v875, %v866
        %v1002 = vpack.c.b16 %v876, %v867
        %v1003 = vpack.c.b16 %v886, %v877
        %v1004 = vpack.c.b16 %v887, %v878
        %v1005 = vpack.c.b16 %v888, %v879
        %v1006 = vpack.c.b16 %v889, %v880
        %v1007 = vpack.c.b16 %v890, %v881
        %v1008 = vpack.c.b16 %v891, %v882
        %v1009 = vpack.c.b16 %v892, %v883
        %v1010 = vpack.c.b16 %v893, %v884
        %v1011 = vpack.c.b16 %v894, %v885
        %v1012 = vpack.c.b16 %v904, %v895
        %v1013 = vpack.c.b16 %v905, %v896
        %v1014 = vpack.c.b16 %v906, %v897
        %v1015 = vpack.c.b16 %v907, %v898
        %v1016 = vpack.c.b16 %v908, %v899
        %v1017 = vpack.c.b16 %v909, %v900
        %v1018 = vpack.c.b16 %v910, %v901
        %v1019 = vpack.c.b16 %v911, %v902
        %v1020 = vpack.c.b16 %v912, %v903
        %v1021 = vpack.c.b16 %v922, %v913
        %v1022 = vpack.c.b16 %v923, %v914
        %v1023 = vpack.c.b16 %v924, %v915
        %v1024 = vpack.c.b16 %v925, %v916
        %v1025 = vpack.c.b16 %v926, %v917
        %v1026 = vpack.c.b16 %v927, %v918
        %v1027 = vpack.c.b16 %v928, %v919
        %v1028 = vpack.c.b16 %v929, %v920
        %v1029 = vpack.c.b16 %v930, %v921
        %v1030 = vpack.c.b16 %v940, %v931
        %v1031 = vpack.c.b16 %v941, %v932
        %v1032 = vpack.c.b16 %v942, %v933
        %v1033 = vpack.c.b16 %v943, %v934
        %v1034 = vpack.c.b16 %v944, %v935
        %v1035 = vpack.c.b16 %v945, %v936
        %v1036 = vpack.c.b16 %v946, %v937
        %v1037 = vpack.c.b16 %v947, %v938
        %v1038 = vpack.c.b16 %v948, %v939
        %v1039 = vpack.c.b16 %v958, %v949
        %v1040 = vpack.c.b16 %v959, %v950
        %v1041 = vpack.c.b16 %v960, %v951
        %v1042 = vpack.c.b16 %v961, %v952
        %v1043 = vpack.c.b16 %v962, %v953
        %v1044 = vpack.c.b16 %v963, %v954
        %v1045 = vpack.c.b16 %v964, %v955
        %v1046 = vpack.c.b16 %v965, %v956
        %v1047 = vpack.c.b16 %v966, %v957
        %v1048 = vpack.c.b16 %v976, %v967
        %v1049 = vpack.c.b16 %v977, %v968
        %v1050 = vpack.c.b16 %v978, %v969
        %v1051 = vpack.c.b16 %v979, %v970
        %v1052 = vpack.c.b16 %v980, %v971
        %v1053 = vpack.c.b16 %v981, %v972
        %v1054 = vpack.c.b16 %v982, %v973
        %v1055 = vpack.c.b16 %v983, %v974
        %v1056 = vpack.c.b16 %v984, %v975
        %1129 = vmatprep.subr.bf16.mxu0 %v986
        %1130 = vmatpush1.bf16.xpose.msra.mxu0 %v985
        %1131 = vmatprep.subr.bf16.mxu0 %v995
        %1132 = vmatpush1.bf16.xpose.msra.mxu0 %v994
        %1133 = vmatprep.subr.bf16.mxu0 %v1004
        %1134 = vmatpush1.bf16.xpose.msra.mxu0 %v1003
        %1135 = vmatprep.subr.bf16.mxu0 %v1013
        %1136 = vmatpush1.bf16.xpose.msra.mxu0 %v1012
        %1137 = vmatprep.subr.bf16.mxu0 %v1022
        %1138 = vmatpush1.bf16.xpose.msra.mxu0 %v1021
        %1139 = vmatprep.subr.bf16.mxu0 %v1031
        %1140 = vmatpush1.bf16.xpose.msra.mxu0 %v1030
        %1141 = vmatprep.subr.bf16.mxu0 %v1040
        %1142 = vmatpush1.bf16.xpose.msra.mxu0 %v1039
        %1143 = vmatprep.subr.bf16.mxu0 %v1049
        %1144 = vmatpush1.bf16.xpose.msra.mxu0 %v1048
        %1145 = vmatprep.subr.bf16.mxu0 0
        %1146 = vmatpush1.bf16.xpose.msra.mxu0 0
        %1147 = vmatprep.subr.bf16.mxu0 0
        %1148 = vmatpush1.bf16.xpose.msra.mxu0 0
        %1149 = vmatprep.subr.bf16.mxu0 0
        %1150 = vmatpush1.bf16.xpose.msra.mxu0 0
        %1151 = vmatprep.subr.bf16.mxu0 0
        %1152 = vmatpush1.bf16.xpose.msra.mxu0 0
        %1153 = vmatprep.subr.bf16.mxu0 0
        %1154 = vmatpush1.bf16.xpose.msra.mxu0 0
        %1155 = vmatprep.subr.bf16.mxu0 0
        %1156 = vmatpush1.bf16.xpose.msra.mxu0 0
        %1157 = vmatprep.subr.bf16.mxu0 0
        %1158 = vmatpush1.bf16.xpose.msra.mxu0 0
        %1159 = vmatprep.subr.bf16.mxu0 0
        %1160 = vmatpush1.bf16.xpose.msra.mxu0 0
        %1161 = vmatprep.mubr.bf16.mxu0 %v639
        %1162 = vmatmul.mubr.bf16.gmra.mrb[0].mxu0 %v638
        %v1163 = vpop.f32.mrb[0].mxu0
        %v1164 = vadd.f32 0.0, %v1163
        %v1165 = vpop.f32.mrb[0].mxu0
        %v1166 = vpop.f32.mrb[0].mxu0
        %v1167 = vadd.f32 0.0, %v1166
        %v1168 = vpop.f32.mrb[0].mxu0
        %1169 = vmatprep.mubr.bf16.mxu0 %v648
        %1170 = vmatmul.mubr.bf16.gmra.mrb[0].mxu0 %v647
        %v1171 = vpop.f32.mrb[0].mxu0
        %v1172 = vadd.f32 0.0, %v1171
        %v1173 = vpop.f32.mrb[0].mxu0
        %v1174 = vpop.f32.mrb[0].mxu0
        %v1175 = vadd.f32 0.0, %v1174
        %v1176 = vpop.f32.mrb[0].mxu0
        %1177 = vmatprep.mubr.bf16.mxu0 %v657
        %1178 = vmatmul.mubr.bf16.gmra.mrb[0].mxu0 %v656
        %v1179 = vpop.f32.mrb[0].mxu0
        %v1180 = vadd.f32 0.0, %v1179
        %v1181 = vpop.f32.mrb[0].mxu0
        %v1182 = vpop.f32.mrb[0].mxu0
        %v1183 = vadd.f32 0.0, %v1182
        %v1184 = vpop.f32.mrb[0].mxu0
        %1185 = vmatprep.mubr.bf16.mxu0 %v666
        %1186 = vmatmul.mubr.bf16.gmra.mrb[0].mxu0 %v665
        %v1187 = vpop.f32.mrb[0].mxu0
        %v1188 = vadd.f32 0.0, %v1187
        %v1189 = vpop.f32.mrb[0].mxu0
        %v1190 = vpop.f32.mrb[0].mxu0
        %v1191 = vpop.f32.mrb[0].mxu0
        %1192 = vdwg.mxu0
        %1193 = vmatprep.subr.bf16.mxu0 %v988
        %1194 = vmatpush1.bf16.xpose.msra.mxu0 %v987
        %1195 = vmatprep.subr.bf16.mxu0 %v997
        %1196 = vmatpush1.bf16.xpose.msra.mxu0 %v996
        %1197 = vmatprep.subr.bf16.mxu0 %v1006
        %1198 = vmatpush1.bf16.xpose.msra.mxu0 %v1005
        %1199 = vmatprep.subr.bf16.mxu0 %v1015
        %1200 = vmatpush1.bf16.xpose.msra.mxu0 %v1014
        %1201 = vmatprep.subr.bf16.mxu0 %v1024
        %1202 = vmatpush1.bf16.xpose.msra.mxu0 %v1023
        %1203 = vmatprep.subr.bf16.mxu0 %v1033
        %1204 = vmatpush1.bf16.xpose.msra.mxu0 %v1032
        %1205 = vmatprep.subr.bf16.mxu0 %v1042
        %1206 = vmatpush1.bf16.xpose.msra.mxu0 %v1041
        %1207 = vmatprep.subr.bf16.mxu0 %v1051
        %1208 = vmatpush1.bf16.xpose.msra.mxu0 %v1050
        %1209 = vmatprep.subr.bf16.mxu0 0
        %1210 = vmatpush1.bf16.xpose.msra.mxu0 0
        %1211 = vmatprep.subr.bf16.mxu0 0
        %1212 = vmatpush1.bf16.xpose.msra.mxu0 0
        %1213 = vmatprep.subr.bf16.mxu0 0
        %1214 = vmatpush1.bf16.xpose.msra.mxu0 0
        %1215 = vmatprep.subr.bf16.mxu0 0
        %1216 = vmatpush1.bf16.xpose.msra.mxu0 0
        %1217 = vmatprep.subr.bf16.mxu0 0
        %1218 = vmatpush1.bf16.xpose.msra.mxu0 0
        %1219 = vmatprep.subr.bf16.mxu0 0
        %1220 = vmatpush1.bf16.xpose.msra.mxu0 0
        %1221 = vmatprep.subr.bf16.mxu0 0
        %1222 = vmatpush1.bf16.xpose.msra.mxu0 0
        %1223 = vmatprep.subr.bf16.mxu0 0
        %1224 = vmatpush1.bf16.xpose.msra.mxu0 0
        %1225 = vmatprep.mubr.bf16.mxu0 %v641
        %1226 = vmatmul.mubr.bf16.gmra.mrb[0].mxu0 %v640
        %v1227 = vpop.f32.mrb[0].mxu0
        %v1228 = vadd.f32 %v1164, %v1227
        %v1229 = vpop.f32.mrb[0].mxu0
        %v1230 = vpop.f32.mrb[0].mxu0
        %v1231 = vadd.f32 %v1167, %v1230
        %v1232 = vpop.f32.mrb[0].mxu0
        %1233 = vmatprep.mubr.bf16.mxu0 %v650
        %1234 = vmatmul.mubr.bf16.gmra.mrb[0].mxu0 %v649
        %v1235 = vpop.f32.mrb[0].mxu0
        %v1236 = vadd.f32 %v1172, %v1235
        %v1237 = vpop.f32.mrb[0].mxu0
        %v1238 = vpop.f32.mrb[0].mxu0
        %v1239 = vadd.f32 %v1175, %v1238
        %v1240 = vpop.f32.mrb[0].mxu0
        %1241 = vmatprep.mubr.bf16.mxu0 %v659
        %1242 = vmatmul.mubr.bf16.gmra.mrb[0].mxu0 %v658
        %v1243 = vpop.f32.mrb[0].mxu0
        %v1244 = vadd.f32 %v1180, %v1243
        %v1245 = vpop.f32.mrb[0].mxu0
        %v1246 = vpop.f32.mrb[0].mxu0
        %v1247 = vadd.f32 %v1183, %v1246
        %v1248 = vpop.f32.mrb[0].mxu0
        %1249 = vmatprep.mubr.bf16.mxu0 %v668
        %1250 = vmatmul.mubr.bf16.gmra.mrb[0].mxu0 %v667
        %v1251 = vpop.f32.mrb[0].mxu0
        %v1252 = vadd.f32 %v1188, %v1251
        %v1253 = vpop.f32.mrb[0].mxu0
        %v1254 = vpop.f32.mrb[0].mxu0
        %v1255 = vpop.f32.mrb[0].mxu0
        %1256 = vdwg.mxu0
        %1257 = vmatprep.subr.bf16.mxu0 %v990
        %1258 = vmatpush1.bf16.xpose.msra.mxu0 %v989
        %1259 = vmatprep.subr.bf16.mxu0 %v999
        %1260 = vmatpush1.bf16.xpose.msra.mxu0 %v998
        %1261 = vmatprep.subr.bf16.mxu0 %v1008
        %1262 = vmatpush1.bf16.xpose.msra.mxu0 %v1007
        %1263 = vmatprep.subr.bf16.mxu0 %v1017
        %1264 = vmatpush1.bf16.xpose.msra.mxu0 %v1016
        %1265 = vmatprep.subr.bf16.mxu0 %v1026
        %1266 = vmatpush1.bf16.xpose.msra.mxu0 %v1025
        %1267 = vmatprep.subr.bf16.mxu0 %v1035
        %1268 = vmatpush1.bf16.xpose.msra.mxu0 %v1034
        %1269 = vmatprep.subr.bf16.mxu0 %v1044
        %1270 = vmatpush1.bf16.xpose.msra.mxu0 %v1043
        %1271 = vmatprep.subr.bf16.mxu0 %v1053
        %1272 = vmatpush1.bf16.xpose.msra.mxu0 %v1052
        %1273 = vmatprep.subr.bf16.mxu0 0
        %1274 = vmatpush1.bf16.xpose.msra.mxu0 0
        %1275 = vmatprep.subr.bf16.mxu0 0
        %1276 = vmatpush1.bf16.xpose.msra.mxu0 0
        %1277 = vmatprep.subr.bf16.mxu0 0
        %1278 = vmatpush1.bf16.xpose.msra.mxu0 0
        %1279 = vmatprep.subr.bf16.mxu0 0
        %1280 = vmatpush1.bf16.xpose.msra.mxu0 0
        %1281 = vmatprep.subr.bf16.mxu0 0
        %1282 = vmatpush1.bf16.xpose.msra.mxu0 0
        %1283 = vmatprep.subr.bf16.mxu0 0
        %1284 = vmatpush1.bf16.xpose.msra.mxu0 0
        %1285 = vmatprep.subr.bf16.mxu0 0
        %1286 = vmatpush1.bf16.xpose.msra.mxu0 0
        %1287 = vmatprep.subr.bf16.mxu0 0
        %1288 = vmatpush1.bf16.xpose.msra.mxu0 0
        %1289 = vmatprep.mubr.bf16.mxu0 %v643
        %1290 = vmatmul.mubr.bf16.gmra.mrb[0].mxu0 %v642
        %v1291 = vpop.f32.mrb[0].mxu0
        %v1292 = vadd.f32 %v1228, %v1291
        %v1293 = vpop.f32.mrb[0].mxu0
        %v1294 = vpop.f32.mrb[0].mxu0
        %v1295 = vadd.f32 %v1231, %v1294
        %v1296 = vpop.f32.mrb[0].mxu0
        %1297 = vmatprep.mubr.bf16.mxu0 %v652
        %1298 = vmatmul.mubr.bf16.gmra.mrb[0].mxu0 %v651
        %v1299 = vpop.f32.mrb[0].mxu0
        %v1300 = vadd.f32 %v1236, %v1299
        %v1301 = vpop.f32.mrb[0].mxu0
        %v1302 = vpop.f32.mrb[0].mxu0
        %v1303 = vadd.f32 %v1239, %v1302
        %v1304 = vpop.f32.mrb[0].mxu0
        %1305 = vmatprep.mubr.bf16.mxu0 %v661
        %1306 = vmatmul.mubr.bf16.gmra.mrb[0].mxu0 %v660
        %v1307 = vpop.f32.mrb[0].mxu0
        %v1308 = vadd.f32 %v1244, %v1307
        %v1309 = vpop.f32.mrb[0].mxu0
        %v1310 = vpop.f32.mrb[0].mxu0
        %v1311 = vadd.f32 %v1247, %v1310
        %v1312 = vpop.f32.mrb[0].mxu0
        %1313 = vmatprep.mubr.bf16.mxu0 %v670
        %1314 = vmatmul.mubr.bf16.gmra.mrb[0].mxu0 %v669
        %v1315 = vpop.f32.mrb[0].mxu0
        %v1316 = vadd.f32 %v1252, %v1315
        %v1317 = vpop.f32.mrb[0].mxu0
        %v1318 = vpop.f32.mrb[0].mxu0
        %v1319 = vpop.f32.mrb[0].mxu0
        %1320 = vdwg.mxu0
        %1321 = vmatprep.subr.bf16.mxu0 %v992
        %1322 = vmatpush1.bf16.xpose.msra.mxu0 %v991
        %1323 = vmatprep.subr.bf16.mxu0 %v1001
        %1324 = vmatpush1.bf16.xpose.msra.mxu0 %v1000
        %1325 = vmatprep.subr.bf16.mxu0 %v1010
        %1326 = vmatpush1.bf16.xpose.msra.mxu0 %v1009
        %1327 = vmatprep.subr.bf16.mxu0 %v1019
        %1328 = vmatpush1.bf16.xpose.msra.mxu0 %v1018
        %1329 = vmatprep.subr.bf16.mxu0 %v1028
        %1330 = vmatpush1.bf16.xpose.msra.mxu0 %v1027
        %1331 = vmatprep.subr.bf16.mxu0 %v1037
        %1332 = vmatpush1.bf16.xpose.msra.mxu0 %v1036
        %1333 = vmatprep.subr.bf16.mxu0 %v1046
        %1334 = vmatpush1.bf16.xpose.msra.mxu0 %v1045
        %1335 = vmatprep.subr.bf16.mxu0 %v1055
        %1336 = vmatpush1.bf16.xpose.msra.mxu0 %v1054
        %1337 = vmatprep.subr.bf16.mxu0 0
        %1338 = vmatpush1.bf16.xpose.msra.mxu0 0
        %1339 = vmatprep.subr.bf16.mxu0 0
        %1340 = vmatpush1.bf16.xpose.msra.mxu0 0
        %1341 = vmatprep.subr.bf16.mxu0 0
        %1342 = vmatpush1.bf16.xpose.msra.mxu0 0
        %1343 = vmatprep.subr.bf16.mxu0 0
        %1344 = vmatpush1.bf16.xpose.msra.mxu0 0
        %1345 = vmatprep.subr.bf16.mxu0 0
        %1346 = vmatpush1.bf16.xpose.msra.mxu0 0
        %1347 = vmatprep.subr.bf16.mxu0 0
        %1348 = vmatpush1.bf16.xpose.msra.mxu0 0
        %1349 = vmatprep.subr.bf16.mxu0 0
        %1350 = vmatpush1.bf16.xpose.msra.mxu0 0
        %1351 = vmatprep.subr.bf16.mxu0 0
        %1352 = vmatpush1.bf16.xpose.msra.mxu0 0
        %1353 = vmatprep.mubr.bf16.mxu0 %v645
        %1354 = vmatmul.mubr.bf16.gmra.mrb[0].mxu0 %v644
        %v1355 = vpop.f32.mrb[0].mxu0
        %v1356 = vadd.f32 %v1292, %v1355
        %v1357 = vpop.f32.mrb[0].mxu0
        %v1358 = vpop.f32.mrb[0].mxu0
        %v1359 = vadd.f32 %v1295, %v1358
        %v1360 = vpop.f32.mrb[0].mxu0
        %1361 = vmatprep.mubr.bf16.mxu0 %v654
        %1362 = vmatmul.mubr.bf16.gmra.mrb[0].mxu0 %v653
        %v1363 = vpop.f32.mrb[0].mxu0
        %v1364 = vadd.f32 %v1300, %v1363
        %v1365 = vpop.f32.mrb[0].mxu0
        %v1366 = vpop.f32.mrb[0].mxu0
        %v1367 = vadd.f32 %v1303, %v1366
        %v1368 = vpop.f32.mrb[0].mxu0
        %1369 = vmatprep.mubr.bf16.mxu0 %v663
        %1370 = vmatmul.mubr.bf16.gmra.mrb[0].mxu0 %v662
        %v1371 = vpop.f32.mrb[0].mxu0
        %v1372 = vadd.f32 %v1308, %v1371
        %v1373 = vpop.f32.mrb[0].mxu0
        %v1374 = vpop.f32.mrb[0].mxu0
        %v1375 = vadd.f32 %v1311, %v1374
        %v1376 = vpop.f32.mrb[0].mxu0
        %1377 = vmatprep.mubr.bf16.mxu0 %v672
        %1378 = vmatmul.mubr.bf16.gmra.mrb[0].mxu0 %v671
        %v1379 = vpop.f32.mrb[0].mxu0
        %v1380 = vadd.f32 %v1316, %v1379
        %v1381 = vpop.f32.mrb[0].mxu0
        %v1382 = vpop.f32.mrb[0].mxu0
        %v1383 = vpop.f32.mrb[0].mxu0
        %1384 = vdwg.mxu0
        %1385 = vmatprep.subr.bf16.mxu0 0
        %1386 = vmatpush1.bf16.xpose.msra.mxu0 %v993
        %1387 = vmatprep.subr.bf16.mxu0 0
        %1388 = vmatpush1.bf16.xpose.msra.mxu0 %v1002
        %1389 = vmatprep.subr.bf16.mxu0 0
        %1390 = vmatpush1.bf16.xpose.msra.mxu0 %v1011
        %1391 = vmatprep.subr.bf16.mxu0 0
        %1392 = vmatpush1.bf16.xpose.msra.mxu0 %v1020
        %1393 = vmatprep.subr.bf16.mxu0 0
        %1394 = vmatpush1.bf16.xpose.msra.mxu0 %v1029
        %1395 = vmatprep.subr.bf16.mxu0 0
        %1396 = vmatpush1.bf16.xpose.msra.mxu0 %v1038
        %1397 = vmatprep.subr.bf16.mxu0 0
        %1398 = vmatpush1.bf16.xpose.msra.mxu0 %v1047
        %1399 = vmatprep.subr.bf16.mxu0 0
        %1400 = vmatpush1.bf16.xpose.msra.mxu0 %v1056
        %1401 = vmatprep.subr.bf16.mxu0 0
        %1402 = vmatpush1.bf16.xpose.msra.mxu0 0
        %1403 = vmatprep.subr.bf16.mxu0 0
        %1404 = vmatpush1.bf16.xpose.msra.mxu0 0
        %1405 = vmatprep.subr.bf16.mxu0 0
        %1406 = vmatpush1.bf16.xpose.msra.mxu0 0
        %1407 = vmatprep.subr.bf16.mxu0 0
        %1408 = vmatpush1.bf16.xpose.msra.mxu0 0
        %1409 = vmatprep.subr.bf16.mxu0 0
        %1410 = vmatpush1.bf16.xpose.msra.mxu0 0
        %1411 = vmatprep.subr.bf16.mxu0 0
        %1412 = vmatpush1.bf16.xpose.msra.mxu0 0
        %1413 = vmatprep.subr.bf16.mxu0 0
        %1414 = vmatpush1.bf16.xpose.msra.mxu0 0
        %1415 = vmatprep.subr.bf16.mxu0 0
        %1416 = vmatpush1.bf16.xpose.msra.mxu0 0
        %1417 = vmatprep.mubr.bf16.mxu0 0
        %1418 = vmatmul.mubr.bf16.gmra.mrb[0].mxu0 %v646
        %v1419 = vpop.f32.mrb[0].mxu0
        %v1420 = vadd.f32 %v1356, %v1419
        %v1421 = vpop.f32.mrb[0].mxu0
        %v1422 = vpop.f32.mrb[0].mxu0
        %v1423 = vadd.f32 %v1359, %v1422
        %v1424 = vpop.f32.mrb[0].mxu0
        %1425 = vmatprep.mubr.bf16.mxu0 0
        %1426 = vmatmul.mubr.bf16.gmra.mrb[0].mxu0 %v655
        %v1427 = vpop.f32.mrb[0].mxu0
        %v1428 = vadd.f32 %v1364, %v1427
        %v1429 = vpop.f32.mrb[0].mxu0
        %v1430 = vpop.f32.mrb[0].mxu0
        %v1431 = vadd.f32 %v1367, %v1430
        %v1432 = vpop.f32.mrb[0].mxu0
        %1433 = vmatprep.mubr.bf16.mxu0 0
        %1434 = vmatmul.mubr.bf16.gmra.mrb[0].mxu0 %v664
        %v1435 = vpop.f32.mrb[0].mxu0
        %v1436 = vadd.f32 %v1372, %v1435
        %v1437 = vpop.f32.mrb[0].mxu0
        %v1438 = vpop.f32.mrb[0].mxu0
        %v1439 = vadd.f32 %v1375, %v1438
        %v1440 = vpop.f32.mrb[0].mxu0
        %1441 = vmatprep.mubr.bf16.mxu0 0
        %1442 = vmatmul.mubr.bf16.gmra.mrb[0].mxu0 %v673
        %v1443 = vpop.f32.mrb[0].mxu0
        %v1444 = vadd.f32 %v1380, %v1443
        %v1445 = vpop.f32.mrb[0].mxu0
        %v1446 = vpop.f32.mrb[0].mxu0
        %v1447 = vpop.f32.mrb[0].mxu0
        %1448 = vdwg.mxu0
        %v1449 = vadd.f32 %v674, %v1420
        %v1450 = vadd.f32 %v675, %v1423
        %v1451 = vadd.f32 %v676, %v1428
        %v1452 = vadd.f32 %v677, %v1431
        %v1453 = vadd.f32 %v678, %v1436
        %v1454 = vadd.f32 %v679, %v1439
        %v1455 = vadd.f32 %v680, %v1444
        %1456 = vst [vmem:[#allocation2] sm:$0xff] %v1449
        %1457 = vst [vmem:[#allocation2 + $0x8] sm:$0xff] %v1450
        %1458 = vst [vmem:[#allocation2 + $0x10] sm:$0xff] %v1451
        %1459 = vst [vmem:[#allocation2 + $0x18] sm:$0xff] %v1452
        %1460 = vst [vmem:[#allocation2 + $0x20] sm:$0xff] %v1453
        %1461 = vst [vmem:[#allocation2 + $0x28] sm:$0xff] %v1454
        %1462 = vst [vmem:[#allocation2 + $0x30] sm:$0x1] %v1455
        %p1463 = scmp.eq.s32.totalorder %s33, 1
        // Predicated region
        $region65: #{tpu_custom_call.1} parent=39 // pred_check
          %p1464 = pneg %p1463
        $region66: #{tpu_custom_call.1} parent=39 // pred_check_branch
          %1466 = sbr.rel (%p1464) target = $region68
        $region67: #{tpu_custom_call.1} parent=39 // pred_region
          %v1467 = vld [vmem:[#allocation2] sm:$0xff]
          %v1468 = vld [vmem:[#allocation2 + $0x8] sm:$0xff]
          %v1469 = vld [vmem:[#allocation2 + $0x10] sm:$0xff]
          %v1470 = vld [vmem:[#allocation2 + $0x18] sm:$0xff]
          %v1471 = vld [vmem:[#allocation2 + $0x20] sm:$0xff]
          %v1472 = vld [vmem:[#allocation2 + $0x28] sm:$0xff]
          %v1473 = vld [vmem:[#allocation2 + $0x30] sm:$0x1]
          %v1474 = vadd.f32 %v1467, %v1468
          %v1475 = vadd.f32 %v1474, %v1469
          %v1476 = vadd.f32 %v1475, %v1470
          %v1477 = vadd.f32 %v1476, %v1471
          %v1478 = vadd.f32 %v1477, %v1472
          %vm1479 = vcmask 1040384
          %v1480 = vsel %vm1479, %v1473, 0.0
          %v1481 = vadd.f32 %v1478, %v1480
          %v1482 = vrot.slane %v1481, 4
          %v1483 = vadd.f32 %v1481, %v1482
          %v1484 = vrot.slane %v1483, 2
          %v1485 = vadd.f32 %v1483, %v1484
          %v1486 = vrot.slane %v1485, 1
          %v1487 = vadd.f32 %v1485, %v1486
          %v1488 = vmul.f32 %v1487, 0.020408163
          %v1489 = vmul.f32 %v1467, %v1467
          %v1490 = vmul.f32 %v1468, %v1468
          %v1491 = vmul.f32 %v1469, %v1469
          %v1492 = vmul.f32 %v1470, %v1470
          %v1493 = vmul.f32 %v1471, %v1471
          %v1494 = vmul.f32 %v1472, %v1472
          %v1495 = vmul.f32 %v1473, %v1473
          %v1496 = vadd.f32 %v1489, %v1490
          %v1497 = vadd.f32 %v1496, %v1491
          %v1498 = vadd.f32 %v1497, %v1492
          %v1499 = vadd.f32 %v1498, %v1493
          %v1500 = vadd.f32 %v1499, %v1494
          %v1501 = vsel %vm1479, %v1495, 0.0
          %v1502 = vadd.f32 %v1500, %v1501
          %v1503 = vrot.slane %v1502, 4
          %v1504 = vadd.f32 %v1502, %v1503
          %v1505 = vrot.slane %v1504, 2
          %v1506 = vadd.f32 %v1504, %v1505
          %v1507 = vrot.slane %v1506, 1
          %v1508 = vadd.f32 %v1506, %v1507
          %v1509 = vmul.f32 %v1508, 0.020408163
          %v1510 = vmul.f32 %v1488, %v1488
          %v1511 = vsub.f32 %v1509, %v1510
          %v1512 = vmax.f32 %v1511, 0.0
          %v1513 = vadd.f32 %v1512, 0.001
          %v1514 = vrsqrt.pop %v1513
          %v1515 = vsub.f32 %v1467, %v1488
          %v1516 = vsub.f32 %v1468, %v1488
          %v1517 = vsub.f32 %v1469, %v1488
          %v1518 = vsub.f32 %v1470, %v1488
          %v1519 = vsub.f32 %v1471, %v1488
          %v1520 = vsub.f32 %v1472, %v1488
          %v1521 = vsub.f32 %v1473, %v1488
          %v1522 = vld [vmem:[%s347] sm:$0x1]
          %v1523 = vmul.f32 %v1514, %v1522
          %v1524 = vlaneseq
          %v1525 = vshrl.u32 %v1524, 7
          %v1526 = vsub.s32 0, %v1525
          %v1527 = vrot.slane %v1523, %v1526
          %v1528 = vmul.f32 %v1515, %v1527
          %v1529 = vmul.f32 %v1516, %v1527
          %v1530 = vmul.f32 %v1517, %v1527
          %v1531 = vmul.f32 %v1518, %v1527
          %v1532 = vmul.f32 %v1519, %v1527
          %v1533 = vmul.f32 %v1520, %v1527
          %v1534 = vmul.f32 %v1521, %v1527
          %v1535 = vld [vmem:[%s355] sm:$0x1]
          %v1537 = vlaneseq
          %v1538 = vshrl.u32 %v1537, 7
          %v1539 = vsub.s32 0, %v1538
          %v1540 = vrot.slane %v1535, %v1539
          %v1542 = vadd.f32 %v1528, %v1540
          %v1543 = vadd.f32 %v1529, %v1540
          %v1544 = vadd.f32 %v1530, %v1540
          %v1545 = vadd.f32 %v1531, %v1540
          %v1546 = vadd.f32 %v1532, %v1540
          %v1547 = vadd.f32 %v1533, %v1540
          %v1548 = vadd.f32 %v1534, %v1540
          %1549 = vst [vmem:[%s399] sm:$0xff] %v1542
          %1550 = vst [vmem:[%s399 + $0x8] sm:$0xff] %v1543
          %1551 = vst [vmem:[%s399 + $0x10] sm:$0xff] %v1544
          %1552 = vst [vmem:[%s399 + $0x18] sm:$0xff] %v1545
          %1553 = vst [vmem:[%s399 + $0x20] sm:$0xff] %v1546
          %1554 = vst [vmem:[%s399 + $0x28] sm:$0xff] %v1547
          %1555 = vst [vmem:[%s399 + $0x30] sm:$0x1] %v1548
        $region68: #{tpu_custom_call.1} parent=39 // pred_fallthru
          _
        %s1556 = sand.u32 %s180, 1
        %s1557 = scalar_lea.sflag [#allocation5], %s1556
        %s1558 = sand.u32 %s180, 1
        %s1559 = smul.addr %s1558, 56
        %s1560 = scalar_lea.vmem [#allocation12], %s1559
        // Predicated region
        $region69: #{tpu_custom_call.1} parent=39 // pred_check
          %p1561 = pneg %p190
        $region70: #{tpu_custom_call.1} parent=39 // pred_check_branch
          %1563 = sbr.rel (%p1561) target = $region72
        $region71: #{tpu_custom_call.1} parent=39 // pred_region
          %s1565 = ssub.s32 896, 896
          %1566 = vsyncadd %s1557, %s1565
          %s1567 = smul.addr %s32, 128
          %s1568 = scalar_lea.hbm %s5, %s1567
          %s1569 = sshll.u32 %s1560, 4
          %s1570 = int_to_ptr.vmem [resolvable:$true] %s1569
          %1575 = dma.vmem_to_hbm [thread:$0]  %s1570, 896, %s1568, %s1557, 128, 384, 8
        $region72: #{tpu_custom_call.1} parent=39 // pred_fallthru
          _
      $region40: #{tpu_custom_call.1} parent=5 // pred_fallthru
        _
      %p1576 = scmp.le.s32.totalorder 2, %s23
      // Predicated region
      $region73: #{tpu_custom_call.1} parent=5 // pred_check
        %p1577 = pneg %p1576
      $region74: #{tpu_custom_call.1} parent=5 // pred_check_branch
        %1579 = sbr.rel (%p1577) target = $region76
      $region75: #{tpu_custom_call.1} parent=5 // pred_region
        %s1580 = ssub.s32 %s23, 2
        // Predicated region
        $region77: #{tpu_custom_call.1} parent=75 // pred_check
          %p1581 = pneg %p196
        $region78: #{tpu_custom_call.1} parent=75 // pred_check_branch
          %1583 = sbr.rel (%p1581) target = $region80
        $region79: #{tpu_custom_call.1} parent=75 // pred_region
          %s1584 = sand.u32 %s181, 1
          %s1585 = scalar_lea.sflag [#allocation5], %s1584
          %s1586 = sand.u32 %s181, 1
          %s1587 = smul.addr %s1586, 56
          %s1588 = scalar_lea.vmem [#allocation12], %s1587
          %1589 = dma.done %s1585, 896
        $region80: #{tpu_custom_call.1} parent=75 // pred_fallthru
          _
      $region76: #{tpu_custom_call.1} parent=5 // pred_fallthru
        _
    $region6: #{tpu_custom_call.1} parent=1 // loop_footer
      %s27 = sadd.s32 1, %s23
    $region7: #{tpu_custom_call.1} parent=1 // loop_footer_branch
      %22 = sbr.rel target = $region3
    $region8: #{tpu_custom_call.1} parent=1 // loop_exit
      _
    %1590 = vsyncpa [#allocation4], 1
    %s1591 = scalar_lea.sflag [#allocation4], 1
    %1592 = vsyncpa %s1591, 1
    %1593 = vsyncpa [#allocation7], 1
    %s1594 = scalar_lea.sflag [#allocation7], 1
    %1595 = vsyncpa %s1594, 1
    %1596 = vsyncpa [#allocation10], 1
    %s1597 = scalar_lea.sflag [#allocation10], 1
    %1598 = vsyncpa %s1597, 1
    %1599 = vsyncpa [#allocation5], 1
    %s1600 = scalar_lea.sflag [#allocation5], 1
    %1601 = vsyncpa %s1600, 1

</llo_original>
